<compile_context>
chip_gen: v7x
topology: tpu7x:2x2x1
jax: 0.10.0
libtpu: 0.0.40
codegen_flags: <defaults>
</compile_context>

<pallas_src>
import functools

import numpy as np
import jax
import jax.numpy as jnp
from jax.experimental import pallas as pl
from jax.experimental.pallas import tpu as pltpu


# -----------------------------------------------------------------------------
# Gabor filter bank: replicates cv2.getGaborKernel((5,5), sigma=2, theta,
# lambd=5, gamma=0.5, psi=0, ktype=cv2.CV_32F) in pure NumPy (host-side const).
# -----------------------------------------------------------------------------
def get_gabor_filters(num_filters, ksize=5, sigma=2.0, lambd=5.0, gamma=0.5, psi=0.0):
    half = (ksize - 1) // 2
    ys, xs = np.meshgrid(
        np.arange(-half, half + 1, dtype=np.float64),
        np.arange(-half, half + 1, dtype=np.float64),
        indexing="ij",
    )
    sigma_x, sigma_y = sigma, sigma / gamma
    banks = []
    for i in range(num_filters):
        theta = np.pi * i / num_filters
        c, s = np.cos(theta), np.sin(theta)
        xr = xs * c + ys * s
        yr = -xs * s + ys * c
        k = np.exp(-0.5 * (xr**2 / sigma_x**2 + yr**2 / sigma_y**2)) * np.cos(
            2.0 * np.pi / lambd * xr + psi
        )
        # cv2 fills kernel[ymax - y, xmax - x]; with psi=0 the filter is symmetric
        # under this flip, but apply it anyway for exactness.
        banks.append(k[::-1, ::-1].astype(np.float32))
    return np.stack(banks).reshape(num_filters, 1, ksize, ksize)


# -----------------------------------------------------------------------------
# Pallas kernel: valid 5x5 conv (Cin=1) + bias + ReLU, shifted-MAC formulation.
# Tap loop (dy,dx) is OUTER, channel loop is INNER -> each shifted window is
# read once per grid step and reused for all cb channels.
# -----------------------------------------------------------------------------
def _gabor_conv_kernel(x_ref, w_ref, b_ref, o_ref, *, K, cb):
    # x_ref : (1, H, W)             VMEM  full image for this batch element
    # w_ref : (Cp*K*K,)             SMEM  1-D tap table, resident across the grid
    # b_ref : (Cp,)                 SMEM
    # o_ref : (1, cb, Hout, Wout)   VMEM  true-width output block
    Hout = o_ref.shape[2]
    Wout = o_ref.shape[3]
    KK = K * K
    c0 = pl.program_id(1) * cb  # first output channel handled by this grid step

    accs = [None] * cb
    # 25 statically-unrolled shifted multiply-accumulates on the VPU.
    # Cross-correlation indexing (x[i+dy, j+dx] * w[dy, dx]) == torch Conv2d.
    for dy in range(K):
        for dx in range(K):
            tap = dy * K + dx
            # One (lane-shifted) window load per tap, shared by all cb channels.
            win = x_ref[0, dy:dy + Hout, dx:dx + Wout]
            for c in range(cb):
                w = w_ref[(c0 + c) * KK + tap]
                if tap == 0:
                    # Fold the bias into the accumulator init: no zeros pass,
                    # no separate epilogue bias add.
                    accs[c] = win * w + b_ref[c0 + c]
                else:
                    accs[c] = accs[c] + win * w
    # Epilogue: ReLU fused into the store.
    for c in range(cb):
        o_ref[0, c] = jnp.maximum(accs[c], 0.0)


def _round_up(x, m):
    return (x + m - 1) // m * m


def _vmem_capacity_bytes():
    # Per-TensorCore VMEM: 128 MiB on v5e/v6e, 64 MiB on v7x.  Conservative
    # fallback if the query is unavailable.
    try:
        return int(pltpu.get_tpu_info().vmem_capacity_bytes)
    except Exception:
        return 64 * 1024 * 1024


def gabor_layer_forward(x, weight, bias):
    """relu(conv2d(x, weight, bias)) with valid padding, stride 1 (NCHW)."""
    B, Cin, H, W = x.shape
    assert Cin == 1, "GaborLayer overwrites conv1.weight to (Cout,1,5,5); only Cin==1 is consistent."
    Cout, w_cin, K, K2 = weight.shape
    assert w_cin == 1 and K == K2
    assert H >= K and W >= K
    Hout, Wout = H - K + 1, W - K + 1

    # ---- VMEM budgeting (accounts for the double-buffered full-image input
    # block; adapts to the chip: v7x has 64 MiB/TC, v5e/v6e have 128 MiB). ----
    vmem_cap = _vmem_capacity_bytes()
    budget = int(vmem_cap * 0.55)  # leave headroom for compiler temps
    in_tile_bytes = _round_up(H, 8) * _round_up(W, 128) * 4          # one input buffer
    out_row_bytes = _round_up(Hout, 8) * _round_up(Wout, 128) * 4    # one output channel
    # 2x input buffers + (2x output buffers + ~1 accumulator copy) per channel.
    cb_cap = (budget - 2 * in_tile_bytes) // (3 * out_row_bytes)
    cb = int(max(1, min(Cout, cb_cap)))

    # Pad the channel dim (tiny weight/bias arrays only) so cb always divides it:
    # avoids pathological cb=1 grids for prime/awkward Cout.
    Cp = _round_up(Cout, cb)
    n_cblk = Cp // cb

    x_img = x[:, 0].astype(jnp.float32)          # (B, H, W); no host-side spatial pad
    w_flat = weight.reshape(Cout, K * K).astype(jnp.float32)
    b_vec = bias.astype(jnp.float32)
    if Cp != Cout:
        w_flat = jnp.pad(w_flat, ((0, Cp - Cout), (0, 0)))
        b_vec = jnp.pad(b_vec, (0, Cp - Cout))
    w_flat = w_flat.reshape(-1)                  # 1-D SMEM table: no (Cout,25)->(Cout,128) padding

    grid = (B, n_cblk)
    kernel = functools.partial(_gabor_conv_kernel, K=K, cb=cb)

    cost = pl.CostEstimate(
        flops=2 * B * Cp * Hout * Wout * K * K,
        bytes_accessed=4 * (B * H * W + Cp * K * K + Cp + B * Cp * Hout * Wout),
        transcendentals=0,
    )

    # Megacore: shard the batch axis (disjoint images) when B >= 2; sharding the
    # channel axis would make both cores DMA the same full image.
    dim_sem = ("parallel", "arbitrary") if B >= 2 else ("parallel", "parallel")

    out = pl.pallas_call(
        kernel,
        out_shape=jax.ShapeDtypeStruct((B, Cp, Hout, Wout), jnp.float32),
        grid=grid,
        in_specs=[
            # Full image per batch element; block index is constant along the inner
            # channel-block axis, so it is not re-DMAed between those steps.
            pl.BlockSpec((1, H, W), lambda b, c: (b, 0, 0)),
            # Tiny weight/bias tables resident in SMEM for the whole grid.
            pl.BlockSpec(memory_space=pltpu.MemorySpace.SMEM),
            pl.BlockSpec(memory_space=pltpu.MemorySpace.SMEM),
        ],
        out_specs=pl.BlockSpec((1, cb, Hout, Wout), lambda b, c: (b, c, 0, 0)),
        compiler_params=pltpu.CompilerParams(
            dimension_semantics=dim_sem,
            vmem_limit_bytes=int(vmem_cap * 0.75),
        ),
        cost_estimate=cost,
    )(x_img, w_flat, b_vec)

    if Cp != Cout:
        out = out[:, :Cout]
    return out


if __name__ == "__main__":
    key = jax.random.PRNGKey(0)
    B, Cin, H, W = 2, 1, 16, 16
    Cout, K = 4, 5

    kx, kb = jax.random.split(key)
    x = jax.random.normal(kx, (B, Cin, H, W), dtype=jnp.float32)
    weight = jnp.asarray(get_gabor_filters(Cout, K))  # (Cout, 1, 5, 5) fixed Gabor bank
    # Default Conv2d bias ~ U(-1/sqrt(fan_in), 1/sqrt(fan_in)), fan_in = Cin*K*K.
    bound = 1.0 / np.sqrt(Cin * K * K)
    bias = jax.random.uniform(kb, (Cout,), jnp.float32, -bound, bound)

    out = jax.jit(gabor_layer_forward)(x, weight, bias)
    out = jax.block_until_ready(out)

    # Pure-JAX reference: Conv2d (cross-correlation) + bias + ReLU.
    ref = jax.lax.conv_general_dilated(
        x, weight, window_strides=(1, 1), padding="VALID",
        dimension_numbers=("NCHW", "OIHW", "NCHW"),
    )
    ref = jnp.maximum(ref + bias[None, :, None, None], 0.0)

    assert out.shape == (B, Cout, H - K + 1, W - K + 1), out.shape
    max_err = float(jnp.max(jnp.abs(out - ref)))
    if max_err > 1e-4:
        raise AssertionError(f"mismatch vs reference: max abs err = {max_err}")
    print("KERNEL_OK")
</pallas_src>

<mosaic_0001>
module attributes {stable_mosaic.version = 11 : i64} {
  func.func @_gabor_conv_kernel(%arg0: i32, %arg1: i32, %arg2: memref<1x16x16xf32, #tpu.memory_space<vmem>>, %arg3: memref<100xf32, #tpu.memory_space<smem>>, %arg4: memref<4xf32, #tpu.memory_space<smem>>, %arg5: memref<1x4x12x12xf32, #tpu.memory_space<vmem>>) attributes {dimension_semantics = [#tpu.dimension_semantics<parallel>, #tpu.dimension_semantics<arbitrary>], iteration_bounds = array<i64: 2, 1>, scalar_prefetch = 0 : i64, scratch_operands = 0 : i64, tpu.core_type = #tpu.core_type<tc>, window_params = [{transform_indices = @transform_0, window_bounds = array<i64: 1, 16, 16>}, {transform_indices = @transform_1, window_bounds = array<i64: 100>}, {transform_indices = @transform_2, window_bounds = array<i64: 4>}, {transform_indices = @transform_3, window_bounds = array<i64: 1, 4, 12, 12>}]} {
    %c4_i32 = arith.constant 4 : i32
    %0 = arith.muli %arg1, %c4_i32 : i32
    %c0 = arith.constant 0 : index
    %c0_0 = arith.constant 0 : index
    %c0_1 = arith.constant 0 : index
    %1 = vector.load %arg2[%c0, %c0_0, %c0_1] : memref<1x16x16xf32, #tpu.memory_space<vmem>>, vector<1x12x12xf32>
    %2 = vector.shape_cast %1 : vector<1x12x12xf32> to vector<12x12xf32>
    %c0_i32 = arith.constant 0 : i32
    %3 = arith.addi %0, %c0_i32 : i32
    %c25_i32 = arith.constant 25 : i32
    %4 = arith.muli %3, %c25_i32 : i32
    %c0_i32_2 = arith.constant 0 : i32
    %5 = arith.addi %4, %c0_i32_2 : i32
    %6 = arith.index_cast %5 : i32 to index
    %7 = memref.load %arg3[%6] : memref<100xf32, #tpu.memory_space<smem>>
    %8 = vector.broadcast %7 : f32 to vector<12x12xf32>
    %9 = arith.mulf %2, %8 : vector<12x12xf32>
    %c0_i32_3 = arith.constant 0 : i32
    %10 = arith.addi %0, %c0_i32_3 : i32
    %11 = arith.index_cast %10 : i32 to index
    %12 = memref.load %arg4[%11] : memref<4xf32, #tpu.memory_space<smem>>
    %13 = vector.broadcast %12 : f32 to vector<12x12xf32>
    %14 = arith.addf %9, %13 : vector<12x12xf32>
    %c1_i32 = arith.constant 1 : i32
    %15 = arith.addi %0, %c1_i32 : i32
    %c25_i32_4 = arith.constant 25 : i32
    %16 = arith.muli %15, %c25_i32_4 : i32
    %c0_i32_5 = arith.constant 0 : i32
    %17 = arith.addi %16, %c0_i32_5 : i32
    %18 = arith.index_cast %17 : i32 to index
    %19 = memref.load %arg3[%18] : memref<100xf32, #tpu.memory_space<smem>>
    %20 = vector.broadcast %19 : f32 to vector<12x12xf32>
    %21 = arith.mulf %2, %20 : vector<12x12xf32>
    %c1_i32_6 = arith.constant 1 : i32
    %22 = arith.addi %0, %c1_i32_6 : i32
    %23 = arith.index_cast %22 : i32 to index
    %24 = memref.load %arg4[%23] : memref<4xf32, #tpu.memory_space<smem>>
    %25 = vector.broadcast %24 : f32 to vector<12x12xf32>
    %26 = arith.addf %21, %25 : vector<12x12xf32>
    %c2_i32 = arith.constant 2 : i32
    %27 = arith.addi %0, %c2_i32 : i32
    %c25_i32_7 = arith.constant 25 : i32
    %28 = arith.muli %27, %c25_i32_7 : i32
    %c0_i32_8 = arith.constant 0 : i32
    %29 = arith.addi %28, %c0_i32_8 : i32
    %30 = arith.index_cast %29 : i32 to index
    %31 = memref.load %arg3[%30] : memref<100xf32, #tpu.memory_space<smem>>
    %32 = vector.broadcast %31 : f32 to vector<12x12xf32>
    %33 = arith.mulf %2, %32 : vector<12x12xf32>
    %c2_i32_9 = arith.constant 2 : i32
    %34 = arith.addi %0, %c2_i32_9 : i32
    %35 = arith.index_cast %34 : i32 to index
    %36 = memref.load %arg4[%35] : memref<4xf32, #tpu.memory_space<smem>>
    %37 = vector.broadcast %36 : f32 to vector<12x12xf32>
    %38 = arith.addf %33, %37 : vector<12x12xf32>
    %c3_i32 = arith.constant 3 : i32
    %39 = arith.addi %0, %c3_i32 : i32
    %c25_i32_10 = arith.constant 25 : i32
    %40 = arith.muli %39, %c25_i32_10 : i32
    %c0_i32_11 = arith.constant 0 : i32
    %41 = arith.addi %40, %c0_i32_11 : i32
    %42 = arith.index_cast %41 : i32 to index
    %43 = memref.load %arg3[%42] : memref<100xf32, #tpu.memory_space<smem>>
    %44 = vector.broadcast %43 : f32 to vector<12x12xf32>
    %45 = arith.mulf %2, %44 : vector<12x12xf32>
    %c3_i32_12 = arith.constant 3 : i32
    %46 = arith.addi %0, %c3_i32_12 : i32
    %47 = arith.index_cast %46 : i32 to index
    %48 = memref.load %arg4[%47] : memref<4xf32, #tpu.memory_space<smem>>
    %49 = vector.broadcast %48 : f32 to vector<12x12xf32>
    %50 = arith.addf %45, %49 : vector<12x12xf32>
    %c0_13 = arith.constant 0 : index
    %c0_14 = arith.constant 0 : index
    %c1 = arith.constant 1 : index
    %51 = vector.load %arg2[%c0_13, %c0_14, %c1] : memref<1x16x16xf32, #tpu.memory_space<vmem>>, vector<1x12x12xf32>
    %52 = vector.shape_cast %51 : vector<1x12x12xf32> to vector<12x12xf32>
    %c0_i32_15 = arith.constant 0 : i32
    %53 = arith.addi %0, %c0_i32_15 : i32
    %c25_i32_16 = arith.constant 25 : i32
    %54 = arith.muli %53, %c25_i32_16 : i32
    %c1_i32_17 = arith.constant 1 : i32
    %55 = arith.addi %54, %c1_i32_17 : i32
    %56 = arith.index_cast %55 : i32 to index
    %57 = memref.load %arg3[%56] : memref<100xf32, #tpu.memory_space<smem>>
    %58 = vector.broadcast %57 : f32 to vector<12x12xf32>
    %59 = arith.mulf %52, %58 : vector<12x12xf32>
    %60 = arith.addf %14, %59 : vector<12x12xf32>
    %c1_i32_18 = arith.constant 1 : i32
    %61 = arith.addi %0, %c1_i32_18 : i32
    %c25_i32_19 = arith.constant 25 : i32
    %62 = arith.muli %61, %c25_i32_19 : i32
    %c1_i32_20 = arith.constant 1 : i32
    %63 = arith.addi %62, %c1_i32_20 : i32
    %64 = arith.index_cast %63 : i32 to index
    %65 = memref.load %arg3[%64] : memref<100xf32, #tpu.memory_space<smem>>
    %66 = vector.broadcast %65 : f32 to vector<12x12xf32>
    %67 = arith.mulf %52, %66 : vector<12x12xf32>
    %68 = arith.addf %26, %67 : vector<12x12xf32>
    %c2_i32_21 = arith.constant 2 : i32
    %69 = arith.addi %0, %c2_i32_21 : i32
    %c25_i32_22 = arith.constant 25 : i32
    %70 = arith.muli %69, %c25_i32_22 : i32
    %c1_i32_23 = arith.constant 1 : i32
    %71 = arith.addi %70, %c1_i32_23 : i32
    %72 = arith.index_cast %71 : i32 to index
    %73 = memref.load %arg3[%72] : memref<100xf32, #tpu.memory_space<smem>>
    %74 = vector.broadcast %73 : f32 to vector<12x12xf32>
    %75 = arith.mulf %52, %74 : vector<12x12xf32>
    %76 = arith.addf %38, %75 : vector<12x12xf32>
    %c3_i32_24 = arith.constant 3 : i32
    %77 = arith.addi %0, %c3_i32_24 : i32
    %c25_i32_25 = arith.constant 25 : i32
    %78 = arith.muli %77, %c25_i32_25 : i32
    %c1_i32_26 = arith.constant 1 : i32
    %79 = arith.addi %78, %c1_i32_26 : i32
    %80 = arith.index_cast %79 : i32 to index
    %81 = memref.load %arg3[%80] : memref<100xf32, #tpu.memory_space<smem>>
    %82 = vector.broadcast %81 : f32 to vector<12x12xf32>
    %83 = arith.mulf %52, %82 : vector<12x12xf32>
    %84 = arith.addf %50, %83 : vector<12x12xf32>
    %c0_27 = arith.constant 0 : index
    %c0_28 = arith.constant 0 : index
    %c2 = arith.constant 2 : index
    %85 = vector.load %arg2[%c0_27, %c0_28, %c2] : memref<1x16x16xf32, #tpu.memory_space<vmem>>, vector<1x12x12xf32>
    %86 = vector.shape_cast %85 : vector<1x12x12xf32> to vector<12x12xf32>
    %c0_i32_29 = arith.constant 0 : i32
    %87 = arith.addi %0, %c0_i32_29 : i32
    %c25_i32_30 = arith.constant 25 : i32
    %88 = arith.muli %87, %c25_i32_30 : i32
    %c2_i32_31 = arith.constant 2 : i32
    %89 = arith.addi %88, %c2_i32_31 : i32
    %90 = arith.index_cast %89 : i32 to index
    %91 = memref.load %arg3[%90] : memref<100xf32, #tpu.memory_space<smem>>
    %92 = vector.broadcast %91 : f32 to vector<12x12xf32>
    %93 = arith.mulf %86, %92 : vector<12x12xf32>
    %94 = arith.addf %60, %93 : vector<12x12xf32>
    %c1_i32_32 = arith.constant 1 : i32
    %95 = arith.addi %0, %c1_i32_32 : i32
    %c25_i32_33 = arith.constant 25 : i32
    %96 = arith.muli %95, %c25_i32_33 : i32
    %c2_i32_34 = arith.constant 2 : i32
    %97 = arith.addi %96, %c2_i32_34 : i32
    %98 = arith.index_cast %97 : i32 to index
    %99 = memref.load %arg3[%98] : memref<100xf32, #tpu.memory_space<smem>>
    %100 = vector.broadcast %99 : f32 to vector<12x12xf32>
    %101 = arith.mulf %86, %100 : vector<12x12xf32>
    %102 = arith.addf %68, %101 : vector<12x12xf32>
    %c2_i32_35 = arith.constant 2 : i32
    %103 = arith.addi %0, %c2_i32_35 : i32
    %c25_i32_36 = arith.constant 25 : i32
    %104 = arith.muli %103, %c25_i32_36 : i32
    %c2_i32_37 = arith.constant 2 : i32
    %105 = arith.addi %104, %c2_i32_37 : i32
    %106 = arith.index_cast %105 : i32 to index
    %107 = memref.load %arg3[%106] : memref<100xf32, #tpu.memory_space<smem>>
    %108 = vector.broadcast %107 : f32 to vector<12x12xf32>
    %109 = arith.mulf %86, %108 : vector<12x12xf32>
    %110 = arith.addf %76, %109 : vector<12x12xf32>
    %c3_i32_38 = arith.constant 3 : i32
    %111 = arith.addi %0, %c3_i32_38 : i32
    %c25_i32_39 = arith.constant 25 : i32
    %112 = arith.muli %111, %c25_i32_39 : i32
    %c2_i32_40 = arith.constant 2 : i32
    %113 = arith.addi %112, %c2_i32_40 : i32
    %114 = arith.index_cast %113 : i32 to index
    %115 = memref.load %arg3[%114] : memref<100xf32, #tpu.memory_space<smem>>
    %116 = vector.broadcast %115 : f32 to vector<12x12xf32>
    %117 = arith.mulf %86, %116 : vector<12x12xf32>
    %118 = arith.addf %84, %117 : vector<12x12xf32>
    %c0_41 = arith.constant 0 : index
    %c0_42 = arith.constant 0 : index
    %c3 = arith.constant 3 : index
    %119 = vector.load %arg2[%c0_41, %c0_42, %c3] : memref<1x16x16xf32, #tpu.memory_space<vmem>>, vector<1x12x12xf32>
    %120 = vector.shape_cast %119 : vector<1x12x12xf32> to vector<12x12xf32>
    %c0_i32_43 = arith.constant 0 : i32
    %121 = arith.addi %0, %c0_i32_43 : i32
    %c25_i32_44 = arith.constant 25 : i32
    %122 = arith.muli %121, %c25_i32_44 : i32
    %c3_i32_45 = arith.constant 3 : i32
    %123 = arith.addi %122, %c3_i32_45 : i32
    %124 = arith.index_cast %123 : i32 to index
    %125 = memref.load %arg3[%124] : memref<100xf32, #tpu.memory_space<smem>>
    %126 = vector.broadcast %125 : f32 to vector<12x12xf32>
    %127 = arith.mulf %120, %126 : vector<12x12xf32>
    %128 = arith.addf %94, %127 : vector<12x12xf32>
    %c1_i32_46 = arith.constant 1 : i32
    %129 = arith.addi %0, %c1_i32_46 : i32
    %c25_i32_47 = arith.constant 25 : i32
    %130 = arith.muli %129, %c25_i32_47 : i32
    %c3_i32_48 = arith.constant 3 : i32
    %131 = arith.addi %130, %c3_i32_48 : i32
    %132 = arith.index_cast %131 : i32 to index
    %133 = memref.load %arg3[%132] : memref<100xf32, #tpu.memory_space<smem>>
    %134 = vector.broadcast %133 : f32 to vector<12x12xf32>
    %135 = arith.mulf %120, %134 : vector<12x12xf32>
    %136 = arith.addf %102, %135 : vector<12x12xf32>
    %c2_i32_49 = arith.constant 2 : i32
    %137 = arith.addi %0, %c2_i32_49 : i32
    %c25_i32_50 = arith.constant 25 : i32
    %138 = arith.muli %137, %c25_i32_50 : i32
    %c3_i32_51 = arith.constant 3 : i32
    %139 = arith.addi %138, %c3_i32_51 : i32
    %140 = arith.index_cast %139 : i32 to index
    %141 = memref.load %arg3[%140] : memref<100xf32, #tpu.memory_space<smem>>
    %142 = vector.broadcast %141 : f32 to vector<12x12xf32>
    %143 = arith.mulf %120, %142 : vector<12x12xf32>
    %144 = arith.addf %110, %143 : vector<12x12xf32>
    %c3_i32_52 = arith.constant 3 : i32
    %145 = arith.addi %0, %c3_i32_52 : i32
    %c25_i32_53 = arith.constant 25 : i32
    %146 = arith.muli %145, %c25_i32_53 : i32
    %c3_i32_54 = arith.constant 3 : i32
    %147 = arith.addi %146, %c3_i32_54 : i32
    %148 = arith.index_cast %147 : i32 to index
    %149 = memref.load %arg3[%148] : memref<100xf32, #tpu.memory_space<smem>>
    %150 = vector.broadcast %149 : f32 to vector<12x12xf32>
    %151 = arith.mulf %120, %150 : vector<12x12xf32>
    %152 = arith.addf %118, %151 : vector<12x12xf32>
    %c0_55 = arith.constant 0 : index
    %c0_56 = arith.constant 0 : index
    %c4 = arith.constant 4 : index
    %153 = vector.load %arg2[%c0_55, %c0_56, %c4] : memref<1x16x16xf32, #tpu.memory_space<vmem>>, vector<1x12x12xf32>
    %154 = vector.shape_cast %153 : vector<1x12x12xf32> to vector<12x12xf32>
    %c0_i32_57 = arith.constant 0 : i32
    %155 = arith.addi %0, %c0_i32_57 : i32
    %c25_i32_58 = arith.constant 25 : i32
    %156 = arith.muli %155, %c25_i32_58 : i32
    %c4_i32_59 = arith.constant 4 : i32
    %157 = arith.addi %156, %c4_i32_59 : i32
    %158 = arith.index_cast %157 : i32 to index
    %159 = memref.load %arg3[%158] : memref<100xf32, #tpu.memory_space<smem>>
    %160 = vector.broadcast %159 : f32 to vector<12x12xf32>
    %161 = arith.mulf %154, %160 : vector<12x12xf32>
    %162 = arith.addf %128, %161 : vector<12x12xf32>
    %c1_i32_60 = arith.constant 1 : i32
    %163 = arith.addi %0, %c1_i32_60 : i32
    %c25_i32_61 = arith.constant 25 : i32
    %164 = arith.muli %163, %c25_i32_61 : i32
    %c4_i32_62 = arith.constant 4 : i32
    %165 = arith.addi %164, %c4_i32_62 : i32
    %166 = arith.index_cast %165 : i32 to index
    %167 = memref.load %arg3[%166] : memref<100xf32, #tpu.memory_space<smem>>
    %168 = vector.broadcast %167 : f32 to vector<12x12xf32>
    %169 = arith.mulf %154, %168 : vector<12x12xf32>
    %170 = arith.addf %136, %169 : vector<12x12xf32>
    %c2_i32_63 = arith.constant 2 : i32
    %171 = arith.addi %0, %c2_i32_63 : i32
    %c25_i32_64 = arith.constant 25 : i32
    %172 = arith.muli %171, %c25_i32_64 : i32
    %c4_i32_65 = arith.constant 4 : i32
    %173 = arith.addi %172, %c4_i32_65 : i32
    %174 = arith.index_cast %173 : i32 to index
    %175 = memref.load %arg3[%174] : memref<100xf32, #tpu.memory_space<smem>>
    %176 = vector.broadcast %175 : f32 to vector<12x12xf32>
    %177 = arith.mulf %154, %176 : vector<12x12xf32>
    %178 = arith.addf %144, %177 : vector<12x12xf32>
    %c3_i32_66 = arith.constant 3 : i32
    %179 = arith.addi %0, %c3_i32_66 : i32
    %c25_i32_67 = arith.constant 25 : i32
    %180 = arith.muli %179, %c25_i32_67 : i32
    %c4_i32_68 = arith.constant 4 : i32
    %181 = arith.addi %180, %c4_i32_68 : i32
    %182 = arith.index_cast %181 : i32 to index
    %183 = memref.load %arg3[%182] : memref<100xf32, #tpu.memory_space<smem>>
    %184 = vector.broadcast %183 : f32 to vector<12x12xf32>
    %185 = arith.mulf %154, %184 : vector<12x12xf32>
    %186 = arith.addf %152, %185 : vector<12x12xf32>
    %c0_69 = arith.constant 0 : index
    %c1_70 = arith.constant 1 : index
    %c0_71 = arith.constant 0 : index
    %187 = vector.load %arg2[%c0_69, %c1_70, %c0_71] : memref<1x16x16xf32, #tpu.memory_space<vmem>>, vector<1x12x12xf32>
    %188 = vector.shape_cast %187 : vector<1x12x12xf32> to vector<12x12xf32>
    %c0_i32_72 = arith.constant 0 : i32
    %189 = arith.addi %0, %c0_i32_72 : i32
    %c25_i32_73 = arith.constant 25 : i32
    %190 = arith.muli %189, %c25_i32_73 : i32
    %c5_i32 = arith.constant 5 : i32
    %191 = arith.addi %190, %c5_i32 : i32
    %192 = arith.index_cast %191 : i32 to index
    %193 = memref.load %arg3[%192] : memref<100xf32, #tpu.memory_space<smem>>
    %194 = vector.broadcast %193 : f32 to vector<12x12xf32>
    %195 = arith.mulf %188, %194 : vector<12x12xf32>
    %196 = arith.addf %162, %195 : vector<12x12xf32>
    %c1_i32_74 = arith.constant 1 : i32
    %197 = arith.addi %0, %c1_i32_74 : i32
    %c25_i32_75 = arith.constant 25 : i32
    %198 = arith.muli %197, %c25_i32_75 : i32
    %c5_i32_76 = arith.constant 5 : i32
    %199 = arith.addi %198, %c5_i32_76 : i32
    %200 = arith.index_cast %199 : i32 to index
    %201 = memref.load %arg3[%200] : memref<100xf32, #tpu.memory_space<smem>>
    %202 = vector.broadcast %201 : f32 to vector<12x12xf32>
    %203 = arith.mulf %188, %202 : vector<12x12xf32>
    %204 = arith.addf %170, %203 : vector<12x12xf32>
    %c2_i32_77 = arith.constant 2 : i32
    %205 = arith.addi %0, %c2_i32_77 : i32
    %c25_i32_78 = arith.constant 25 : i32
    %206 = arith.muli %205, %c25_i32_78 : i32
    %c5_i32_79 = arith.constant 5 : i32
    %207 = arith.addi %206, %c5_i32_79 : i32
    %208 = arith.index_cast %207 : i32 to index
    %209 = memref.load %arg3[%208] : memref<100xf32, #tpu.memory_space<smem>>
    %210 = vector.broadcast %209 : f32 to vector<12x12xf32>
    %211 = arith.mulf %188, %210 : vector<12x12xf32>
    %212 = arith.addf %178, %211 : vector<12x12xf32>
    %c3_i32_80 = arith.constant 3 : i32
    %213 = arith.addi %0, %c3_i32_80 : i32
    %c25_i32_81 = arith.constant 25 : i32
    %214 = arith.muli %213, %c25_i32_81 : i32
    %c5_i32_82 = arith.constant 5 : i32
    %215 = arith.addi %214, %c5_i32_82 : i32
    %216 = arith.index_cast %215 : i32 to index
    %217 = memref.load %arg3[%216] : memref<100xf32, #tpu.memory_space<smem>>
    %218 = vector.broadcast %217 : f32 to vector<12x12xf32>
    %219 = arith.mulf %188, %218 : vector<12x12xf32>
    %220 = arith.addf %186, %219 : vector<12x12xf32>
    %c0_83 = arith.constant 0 : index
    %c1_84 = arith.constant 1 : index
    %c1_85 = arith.constant 1 : index
    %221 = vector.load %arg2[%c0_83, %c1_84, %c1_85] : memref<1x16x16xf32, #tpu.memory_space<vmem>>, vector<1x12x12xf32>
    %222 = vector.shape_cast %221 : vector<1x12x12xf32> to vector<12x12xf32>
    %c0_i32_86 = arith.constant 0 : i32
    %223 = arith.addi %0, %c0_i32_86 : i32
    %c25_i32_87 = arith.constant 25 : i32
    %224 = arith.muli %223, %c25_i32_87 : i32
    %c6_i32 = arith.constant 6 : i32
    %225 = arith.addi %224, %c6_i32 : i32
    %226 = arith.index_cast %225 : i32 to index
    %227 = memref.load %arg3[%226] : memref<100xf32, #tpu.memory_space<smem>>
    %228 = vector.broadcast %227 : f32 to vector<12x12xf32>
    %229 = arith.mulf %222, %228 : vector<12x12xf32>
    %230 = arith.addf %196, %229 : vector<12x12xf32>
    %c1_i32_88 = arith.constant 1 : i32
    %231 = arith.addi %0, %c1_i32_88 : i32
    %c25_i32_89 = arith.constant 25 : i32
    %232 = arith.muli %231, %c25_i32_89 : i32
    %c6_i32_90 = arith.constant 6 : i32
    %233 = arith.addi %232, %c6_i32_90 : i32
    %234 = arith.index_cast %233 : i32 to index
    %235 = memref.load %arg3[%234] : memref<100xf32, #tpu.memory_space<smem>>
    %236 = vector.broadcast %235 : f32 to vector<12x12xf32>
    %237 = arith.mulf %222, %236 : vector<12x12xf32>
    %238 = arith.addf %204, %237 : vector<12x12xf32>
    %c2_i32_91 = arith.constant 2 : i32
    %239 = arith.addi %0, %c2_i32_91 : i32
    %c25_i32_92 = arith.constant 25 : i32
    %240 = arith.muli %239, %c25_i32_92 : i32
    %c6_i32_93 = arith.constant 6 : i32
    %241 = arith.addi %240, %c6_i32_93 : i32
    %242 = arith.index_cast %241 : i32 to index
    %243 = memref.load %arg3[%242] : memref<100xf32, #tpu.memory_space<smem>>
    %244 = vector.broadcast %243 : f32 to vector<12x12xf32>
    %245 = arith.mulf %222, %244 : vector<12x12xf32>
    %246 = arith.addf %212, %245 : vector<12x12xf32>
    %c3_i32_94 = arith.constant 3 : i32
    %247 = arith.addi %0, %c3_i32_94 : i32
    %c25_i32_95 = arith.constant 25 : i32
    %248 = arith.muli %247, %c25_i32_95 : i32
    %c6_i32_96 = arith.constant 6 : i32
    %249 = arith.addi %248, %c6_i32_96 : i32
    %250 = arith.index_cast %249 : i32 to index
    %251 = memref.load %arg3[%250] : memref<100xf32, #tpu.memory_space<smem>>
    %252 = vector.broadcast %251 : f32 to vector<12x12xf32>
    %253 = arith.mulf %222, %252 : vector<12x12xf32>
    %254 = arith.addf %220, %253 : vector<12x12xf32>
    %c0_97 = arith.constant 0 : index
    %c1_98 = arith.constant 1 : index
    %c2_99 = arith.constant 2 : index
    %255 = vector.load %arg2[%c0_97, %c1_98, %c2_99] : memref<1x16x16xf32, #tpu.memory_space<vmem>>, vector<1x12x12xf32>
    %256 = vector.shape_cast %255 : vector<1x12x12xf32> to vector<12x12xf32>
    %c0_i32_100 = arith.constant 0 : i32
    %257 = arith.addi %0, %c0_i32_100 : i32
    %c25_i32_101 = arith.constant 25 : i32
    %258 = arith.muli %257, %c25_i32_101 : i32
    %c7_i32 = arith.constant 7 : i32
    %259 = arith.addi %258, %c7_i32 : i32
    %260 = arith.index_cast %259 : i32 to index
    %261 = memref.load %arg3[%260] : memref<100xf32, #tpu.memory_space<smem>>
    %262 = vector.broadcast %261 : f32 to vector<12x12xf32>
    %263 = arith.mulf %256, %262 : vector<12x12xf32>
    %264 = arith.addf %230, %263 : vector<12x12xf32>
    %c1_i32_102 = arith.constant 1 : i32
    %265 = arith.addi %0, %c1_i32_102 : i32
    %c25_i32_103 = arith.constant 25 : i32
    %266 = arith.muli %265, %c25_i32_103 : i32
    %c7_i32_104 = arith.constant 7 : i32
    %267 = arith.addi %266, %c7_i32_104 : i32
    %268 = arith.index_cast %267 : i32 to index
    %269 = memref.load %arg3[%268] : memref<100xf32, #tpu.memory_space<smem>>
    %270 = vector.broadcast %269 : f32 to vector<12x12xf32>
    %271 = arith.mulf %256, %270 : vector<12x12xf32>
    %272 = arith.addf %238, %271 : vector<12x12xf32>
    %c2_i32_105 = arith.constant 2 : i32
    %273 = arith.addi %0, %c2_i32_105 : i32
    %c25_i32_106 = arith.constant 25 : i32
    %274 = arith.muli %273, %c25_i32_106 : i32
    %c7_i32_107 = arith.constant 7 : i32
    %275 = arith.addi %274, %c7_i32_107 : i32
    %276 = arith.index_cast %275 : i32 to index
    %277 = memref.load %arg3[%276] : memref<100xf32, #tpu.memory_space<smem>>
    %278 = vector.broadcast %277 : f32 to vector<12x12xf32>
    %279 = arith.mulf %256, %278 : vector<12x12xf32>
    %280 = arith.addf %246, %279 : vector<12x12xf32>
    %c3_i32_108 = arith.constant 3 : i32
    %281 = arith.addi %0, %c3_i32_108 : i32
    %c25_i32_109 = arith.constant 25 : i32
    %282 = arith.muli %281, %c25_i32_109 : i32
    %c7_i32_110 = arith.constant 7 : i32
    %283 = arith.addi %282, %c7_i32_110 : i32
    %284 = arith.index_cast %283 : i32 to index
    %285 = memref.load %arg3[%284] : memref<100xf32, #tpu.memory_space<smem>>
    %286 = vector.broadcast %285 : f32 to vector<12x12xf32>
    %287 = arith.mulf %256, %286 : vector<12x12xf32>
    %288 = arith.addf %254, %287 : vector<12x12xf32>
    %c0_111 = arith.constant 0 : index
    %c1_112 = arith.constant 1 : index
    %c3_113 = arith.constant 3 : index
    %289 = vector.load %arg2[%c0_111, %c1_112, %c3_113] : memref<1x16x16xf32, #tpu.memory_space<vmem>>, vector<1x12x12xf32>
    %290 = vector.shape_cast %289 : vector<1x12x12xf32> to vector<12x12xf32>
    %c0_i32_114 = arith.constant 0 : i32
    %291 = arith.addi %0, %c0_i32_114 : i32
    %c25_i32_115 = arith.constant 25 : i32
    %292 = arith.muli %291, %c25_i32_115 : i32
    %c8_i32 = arith.constant 8 : i32
    %293 = arith.addi %292, %c8_i32 : i32
    %294 = arith.index_cast %293 : i32 to index
    %295 = memref.load %arg3[%294] : memref<100xf32, #tpu.memory_space<smem>>
    %296 = vector.broadcast %295 : f32 to vector<12x12xf32>
    %297 = arith.mulf %290, %296 : vector<12x12xf32>
    %298 = arith.addf %264, %297 : vector<12x12xf32>
    %c1_i32_116 = arith.constant 1 : i32
    %299 = arith.addi %0, %c1_i32_116 : i32
    %c25_i32_117 = arith.constant 25 : i32
    %300 = arith.muli %299, %c25_i32_117 : i32
    %c8_i32_118 = arith.constant 8 : i32
    %301 = arith.addi %300, %c8_i32_118 : i32
    %302 = arith.index_cast %301 : i32 to index
    %303 = memref.load %arg3[%302] : memref<100xf32, #tpu.memory_space<smem>>
    %304 = vector.broadcast %303 : f32 to vector<12x12xf32>
    %305 = arith.mulf %290, %304 : vector<12x12xf32>
    %306 = arith.addf %272, %305 : vector<12x12xf32>
    %c2_i32_119 = arith.constant 2 : i32
    %307 = arith.addi %0, %c2_i32_119 : i32
    %c25_i32_120 = arith.constant 25 : i32
    %308 = arith.muli %307, %c25_i32_120 : i32
    %c8_i32_121 = arith.constant 8 : i32
    %309 = arith.addi %308, %c8_i32_121 : i32
    %310 = arith.index_cast %309 : i32 to index
    %311 = memref.load %arg3[%310] : memref<100xf32, #tpu.memory_space<smem>>
    %312 = vector.broadcast %311 : f32 to vector<12x12xf32>
    %313 = arith.mulf %290, %312 : vector<12x12xf32>
    %314 = arith.addf %280, %313 : vector<12x12xf32>
    %c3_i32_122 = arith.constant 3 : i32
    %315 = arith.addi %0, %c3_i32_122 : i32
    %c25_i32_123 = arith.constant 25 : i32
    %316 = arith.muli %315, %c25_i32_123 : i32
    %c8_i32_124 = arith.constant 8 : i32
    %317 = arith.addi %316, %c8_i32_124 : i32
    %318 = arith.index_cast %317 : i32 to index
    %319 = memref.load %arg3[%318] : memref<100xf32, #tpu.memory_space<smem>>
    %320 = vector.broadcast %319 : f32 to vector<12x12xf32>
    %321 = arith.mulf %290, %320 : vector<12x12xf32>
    %322 = arith.addf %288, %321 : vector<12x12xf32>
    %c0_125 = arith.constant 0 : index
    %c1_126 = arith.constant 1 : index
    %c4_127 = arith.constant 4 : index
    %323 = vector.load %arg2[%c0_125, %c1_126, %c4_127] : memref<1x16x16xf32, #tpu.memory_space<vmem>>, vector<1x12x12xf32>
    %324 = vector.shape_cast %323 : vector<1x12x12xf32> to vector<12x12xf32>
    %c0_i32_128 = arith.constant 0 : i32
    %325 = arith.addi %0, %c0_i32_128 : i32
    %c25_i32_129 = arith.constant 25 : i32
    %326 = arith.muli %325, %c25_i32_129 : i32
    %c9_i32 = arith.constant 9 : i32
    %327 = arith.addi %326, %c9_i32 : i32
    %328 = arith.index_cast %327 : i32 to index
    %329 = memref.load %arg3[%328] : memref<100xf32, #tpu.memory_space<smem>>
    %330 = vector.broadcast %329 : f32 to vector<12x12xf32>
    %331 = arith.mulf %324, %330 : vector<12x12xf32>
    %332 = arith.addf %298, %331 : vector<12x12xf32>
    %c1_i32_130 = arith.constant 1 : i32
    %333 = arith.addi %0, %c1_i32_130 : i32
    %c25_i32_131 = arith.constant 25 : i32
    %334 = arith.muli %333, %c25_i32_131 : i32
    %c9_i32_132 = arith.constant 9 : i32
    %335 = arith.addi %334, %c9_i32_132 : i32
    %336 = arith.index_cast %335 : i32 to index
    %337 = memref.load %arg3[%336] : memref<100xf32, #tpu.memory_space<smem>>
    %338 = vector.broadcast %337 : f32 to vector<12x12xf32>
    %339 = arith.mulf %324, %338 : vector<12x12xf32>
    %340 = arith.addf %306, %339 : vector<12x12xf32>
    %c2_i32_133 = arith.constant 2 : i32
    %341 = arith.addi %0, %c2_i32_133 : i32
    %c25_i32_134 = arith.constant 25 : i32
    %342 = arith.muli %341, %c25_i32_134 : i32
    %c9_i32_135 = arith.constant 9 : i32
    %343 = arith.addi %342, %c9_i32_135 : i32
    %344 = arith.index_cast %343 : i32 to index
    %345 = memref.load %arg3[%344] : memref<100xf32, #tpu.memory_space<smem>>
    %346 = vector.broadcast %345 : f32 to vector<12x12xf32>
    %347 = arith.mulf %324, %346 : vector<12x12xf32>
    %348 = arith.addf %314, %347 : vector<12x12xf32>
    %c3_i32_136 = arith.constant 3 : i32
    %349 = arith.addi %0, %c3_i32_136 : i32
    %c25_i32_137 = arith.constant 25 : i32
    %350 = arith.muli %349, %c25_i32_137 : i32
    %c9_i32_138 = arith.constant 9 : i32
    %351 = arith.addi %350, %c9_i32_138 : i32
    %352 = arith.index_cast %351 : i32 to index
    %353 = memref.load %arg3[%352] : memref<100xf32, #tpu.memory_space<smem>>
    %354 = vector.broadcast %353 : f32 to vector<12x12xf32>
    %355 = arith.mulf %324, %354 : vector<12x12xf32>
    %356 = arith.addf %322, %355 : vector<12x12xf32>
    %c0_139 = arith.constant 0 : index
    %c2_140 = arith.constant 2 : index
    %c0_141 = arith.constant 0 : index
    %357 = vector.load %arg2[%c0_139, %c2_140, %c0_141] : memref<1x16x16xf32, #tpu.memory_space<vmem>>, vector<1x12x12xf32>
    %358 = vector.shape_cast %357 : vector<1x12x12xf32> to vector<12x12xf32>
    %c0_i32_142 = arith.constant 0 : i32
    %359 = arith.addi %0, %c0_i32_142 : i32
    %c25_i32_143 = arith.constant 25 : i32
    %360 = arith.muli %359, %c25_i32_143 : i32
    %c10_i32 = arith.constant 10 : i32
    %361 = arith.addi %360, %c10_i32 : i32
    %362 = arith.index_cast %361 : i32 to index
    %363 = memref.load %arg3[%362] : memref<100xf32, #tpu.memory_space<smem>>
    %364 = vector.broadcast %363 : f32 to vector<12x12xf32>
    %365 = arith.mulf %358, %364 : vector<12x12xf32>
    %366 = arith.addf %332, %365 : vector<12x12xf32>
    %c1_i32_144 = arith.constant 1 : i32
    %367 = arith.addi %0, %c1_i32_144 : i32
    %c25_i32_145 = arith.constant 25 : i32
    %368 = arith.muli %367, %c25_i32_145 : i32
    %c10_i32_146 = arith.constant 10 : i32
    %369 = arith.addi %368, %c10_i32_146 : i32
    %370 = arith.index_cast %369 : i32 to index
    %371 = memref.load %arg3[%370] : memref<100xf32, #tpu.memory_space<smem>>
    %372 = vector.broadcast %371 : f32 to vector<12x12xf32>
    %373 = arith.mulf %358, %372 : vector<12x12xf32>
    %374 = arith.addf %340, %373 : vector<12x12xf32>
    %c2_i32_147 = arith.constant 2 : i32
    %375 = arith.addi %0, %c2_i32_147 : i32
    %c25_i32_148 = arith.constant 25 : i32
    %376 = arith.muli %375, %c25_i32_148 : i32
    %c10_i32_149 = arith.constant 10 : i32
    %377 = arith.addi %376, %c10_i32_149 : i32
    %378 = arith.index_cast %377 : i32 to index
    %379 = memref.load %arg3[%378] : memref<100xf32, #tpu.memory_space<smem>>
    %380 = vector.broadcast %379 : f32 to vector<12x12xf32>
    %381 = arith.mulf %358, %380 : vector<12x12xf32>
    %382 = arith.addf %348, %381 : vector<12x12xf32>
    %c3_i32_150 = arith.constant 3 : i32
    %383 = arith.addi %0, %c3_i32_150 : i32
    %c25_i32_151 = arith.constant 25 : i32
    %384 = arith.muli %383, %c25_i32_151 : i32
    %c10_i32_152 = arith.constant 10 : i32
    %385 = arith.addi %384, %c10_i32_152 : i32
    %386 = arith.index_cast %385 : i32 to index
    %387 = memref.load %arg3[%386] : memref<100xf32, #tpu.memory_space<smem>>
    %388 = vector.broadcast %387 : f32 to vector<12x12xf32>
    %389 = arith.mulf %358, %388 : vector<12x12xf32>
    %390 = arith.addf %356, %389 : vector<12x12xf32>
    %c0_153 = arith.constant 0 : index
    %c2_154 = arith.constant 2 : index
    %c1_155 = arith.constant 1 : index
    %391 = vector.load %arg2[%c0_153, %c2_154, %c1_155] : memref<1x16x16xf32, #tpu.memory_space<vmem>>, vector<1x12x12xf32>
    %392 = vector.shape_cast %391 : vector<1x12x12xf32> to vector<12x12xf32>
    %c0_i32_156 = arith.constant 0 : i32
    %393 = arith.addi %0, %c0_i32_156 : i32
    %c25_i32_157 = arith.constant 25 : i32
    %394 = arith.muli %393, %c25_i32_157 : i32
    %c11_i32 = arith.constant 11 : i32
    %395 = arith.addi %394, %c11_i32 : i32
    %396 = arith.index_cast %395 : i32 to index
    %397 = memref.load %arg3[%396] : memref<100xf32, #tpu.memory_space<smem>>
    %398 = vector.broadcast %397 : f32 to vector<12x12xf32>
    %399 = arith.mulf %392, %398 : vector<12x12xf32>
    %400 = arith.addf %366, %399 : vector<12x12xf32>
    %c1_i32_158 = arith.constant 1 : i32
    %401 = arith.addi %0, %c1_i32_158 : i32
    %c25_i32_159 = arith.constant 25 : i32
    %402 = arith.muli %401, %c25_i32_159 : i32
    %c11_i32_160 = arith.constant 11 : i32
    %403 = arith.addi %402, %c11_i32_160 : i32
    %404 = arith.index_cast %403 : i32 to index
    %405 = memref.load %arg3[%404] : memref<100xf32, #tpu.memory_space<smem>>
    %406 = vector.broadcast %405 : f32 to vector<12x12xf32>
    %407 = arith.mulf %392, %406 : vector<12x12xf32>
    %408 = arith.addf %374, %407 : vector<12x12xf32>
    %c2_i32_161 = arith.constant 2 : i32
    %409 = arith.addi %0, %c2_i32_161 : i32
    %c25_i32_162 = arith.constant 25 : i32
    %410 = arith.muli %409, %c25_i32_162 : i32
    %c11_i32_163 = arith.constant 11 : i32
    %411 = arith.addi %410, %c11_i32_163 : i32
    %412 = arith.index_cast %411 : i32 to index
    %413 = memref.load %arg3[%412] : memref<100xf32, #tpu.memory_space<smem>>
    %414 = vector.broadcast %413 : f32 to vector<12x12xf32>
    %415 = arith.mulf %392, %414 : vector<12x12xf32>
    %416 = arith.addf %382, %415 : vector<12x12xf32>
    %c3_i32_164 = arith.constant 3 : i32
    %417 = arith.addi %0, %c3_i32_164 : i32
    %c25_i32_165 = arith.constant 25 : i32
    %418 = arith.muli %417, %c25_i32_165 : i32
    %c11_i32_166 = arith.constant 11 : i32
    %419 = arith.addi %418, %c11_i32_166 : i32
    %420 = arith.index_cast %419 : i32 to index
    %421 = memref.load %arg3[%420] : memref<100xf32, #tpu.memory_space<smem>>
    %422 = vector.broadcast %421 : f32 to vector<12x12xf32>
    %423 = arith.mulf %392, %422 : vector<12x12xf32>
    %424 = arith.addf %390, %423 : vector<12x12xf32>
    %c0_167 = arith.constant 0 : index
    %c2_168 = arith.constant 2 : index
    %c2_169 = arith.constant 2 : index
    %425 = vector.load %arg2[%c0_167, %c2_168, %c2_169] : memref<1x16x16xf32, #tpu.memory_space<vmem>>, vector<1x12x12xf32>
    %426 = vector.shape_cast %425 : vector<1x12x12xf32> to vector<12x12xf32>
    %c0_i32_170 = arith.constant 0 : i32
    %427 = arith.addi %0, %c0_i32_170 : i32
    %c25_i32_171 = arith.constant 25 : i32
    %428 = arith.muli %427, %c25_i32_171 : i32
    %c12_i32 = arith.constant 12 : i32
    %429 = arith.addi %428, %c12_i32 : i32
    %430 = arith.index_cast %429 : i32 to index
    %431 = memref.load %arg3[%430] : memref<100xf32, #tpu.memory_space<smem>>
    %432 = vector.broadcast %431 : f32 to vector<12x12xf32>
    %433 = arith.mulf %426, %432 : vector<12x12xf32>
    %434 = arith.addf %400, %433 : vector<12x12xf32>
    %c1_i32_172 = arith.constant 1 : i32
    %435 = arith.addi %0, %c1_i32_172 : i32
    %c25_i32_173 = arith.constant 25 : i32
    %436 = arith.muli %435, %c25_i32_173 : i32
    %c12_i32_174 = arith.constant 12 : i32
    %437 = arith.addi %436, %c12_i32_174 : i32
    %438 = arith.index_cast %437 : i32 to index
    %439 = memref.load %arg3[%438] : memref<100xf32, #tpu.memory_space<smem>>
    %440 = vector.broadcast %439 : f32 to vector<12x12xf32>
    %441 = arith.mulf %426, %440 : vector<12x12xf32>
    %442 = arith.addf %408, %441 : vector<12x12xf32>
    %c2_i32_175 = arith.constant 2 : i32
    %443 = arith.addi %0, %c2_i32_175 : i32
    %c25_i32_176 = arith.constant 25 : i32
    %444 = arith.muli %443, %c25_i32_176 : i32
    %c12_i32_177 = arith.constant 12 : i32
    %445 = arith.addi %444, %c12_i32_177 : i32
    %446 = arith.index_cast %445 : i32 to index
    %447 = memref.load %arg3[%446] : memref<100xf32, #tpu.memory_space<smem>>
    %448 = vector.broadcast %447 : f32 to vector<12x12xf32>
    %449 = arith.mulf %426, %448 : vector<12x12xf32>
    %450 = arith.addf %416, %449 : vector<12x12xf32>
    %c3_i32_178 = arith.constant 3 : i32
    %451 = arith.addi %0, %c3_i32_178 : i32
    %c25_i32_179 = arith.constant 25 : i32
    %452 = arith.muli %451, %c25_i32_179 : i32
    %c12_i32_180 = arith.constant 12 : i32
    %453 = arith.addi %452, %c12_i32_180 : i32
    %454 = arith.index_cast %453 : i32 to index
    %455 = memref.load %arg3[%454] : memref<100xf32, #tpu.memory_space<smem>>
    %456 = vector.broadcast %455 : f32 to vector<12x12xf32>
    %457 = arith.mulf %426, %456 : vector<12x12xf32>
    %458 = arith.addf %424, %457 : vector<12x12xf32>
    %c0_181 = arith.constant 0 : index
    %c2_182 = arith.constant 2 : index
    %c3_183 = arith.constant 3 : index
    %459 = vector.load %arg2[%c0_181, %c2_182, %c3_183] : memref<1x16x16xf32, #tpu.memory_space<vmem>>, vector<1x12x12xf32>
    %460 = vector.shape_cast %459 : vector<1x12x12xf32> to vector<12x12xf32>
    %c0_i32_184 = arith.constant 0 : i32
    %461 = arith.addi %0, %c0_i32_184 : i32
    %c25_i32_185 = arith.constant 25 : i32
    %462 = arith.muli %461, %c25_i32_185 : i32
    %c13_i32 = arith.constant 13 : i32
    %463 = arith.addi %462, %c13_i32 : i32
    %464 = arith.index_cast %463 : i32 to index
    %465 = memref.load %arg3[%464] : memref<100xf32, #tpu.memory_space<smem>>
    %466 = vector.broadcast %465 : f32 to vector<12x12xf32>
    %467 = arith.mulf %460, %466 : vector<12x12xf32>
    %468 = arith.addf %434, %467 : vector<12x12xf32>
    %c1_i32_186 = arith.constant 1 : i32
    %469 = arith.addi %0, %c1_i32_186 : i32
    %c25_i32_187 = arith.constant 25 : i32
    %470 = arith.muli %469, %c25_i32_187 : i32
    %c13_i32_188 = arith.constant 13 : i32
    %471 = arith.addi %470, %c13_i32_188 : i32
    %472 = arith.index_cast %471 : i32 to index
    %473 = memref.load %arg3[%472] : memref<100xf32, #tpu.memory_space<smem>>
    %474 = vector.broadcast %473 : f32 to vector<12x12xf32>
    %475 = arith.mulf %460, %474 : vector<12x12xf32>
    %476 = arith.addf %442, %475 : vector<12x12xf32>
    %c2_i32_189 = arith.constant 2 : i32
    %477 = arith.addi %0, %c2_i32_189 : i32
    %c25_i32_190 = arith.constant 25 : i32
    %478 = arith.muli %477, %c25_i32_190 : i32
    %c13_i32_191 = arith.constant 13 : i32
    %479 = arith.addi %478, %c13_i32_191 : i32
    %480 = arith.index_cast %479 : i32 to index
    %481 = memref.load %arg3[%480] : memref<100xf32, #tpu.memory_space<smem>>
    %482 = vector.broadcast %481 : f32 to vector<12x12xf32>
    %483 = arith.mulf %460, %482 : vector<12x12xf32>
    %484 = arith.addf %450, %483 : vector<12x12xf32>
    %c3_i32_192 = arith.constant 3 : i32
    %485 = arith.addi %0, %c3_i32_192 : i32
    %c25_i32_193 = arith.constant 25 : i32
    %486 = arith.muli %485, %c25_i32_193 : i32
    %c13_i32_194 = arith.constant 13 : i32
    %487 = arith.addi %486, %c13_i32_194 : i32
    %488 = arith.index_cast %487 : i32 to index
    %489 = memref.load %arg3[%488] : memref<100xf32, #tpu.memory_space<smem>>
    %490 = vector.broadcast %489 : f32 to vector<12x12xf32>
    %491 = arith.mulf %460, %490 : vector<12x12xf32>
    %492 = arith.addf %458, %491 : vector<12x12xf32>
    %c0_195 = arith.constant 0 : index
    %c2_196 = arith.constant 2 : index
    %c4_197 = arith.constant 4 : index
    %493 = vector.load %arg2[%c0_195, %c2_196, %c4_197] : memref<1x16x16xf32, #tpu.memory_space<vmem>>, vector<1x12x12xf32>
    %494 = vector.shape_cast %493 : vector<1x12x12xf32> to vector<12x12xf32>
    %c0_i32_198 = arith.constant 0 : i32
    %495 = arith.addi %0, %c0_i32_198 : i32
    %c25_i32_199 = arith.constant 25 : i32
    %496 = arith.muli %495, %c25_i32_199 : i32
    %c14_i32 = arith.constant 14 : i32
    %497 = arith.addi %496, %c14_i32 : i32
    %498 = arith.index_cast %497 : i32 to index
    %499 = memref.load %arg3[%498] : memref<100xf32, #tpu.memory_space<smem>>
    %500 = vector.broadcast %499 : f32 to vector<12x12xf32>
    %501 = arith.mulf %494, %500 : vector<12x12xf32>
    %502 = arith.addf %468, %501 : vector<12x12xf32>
    %c1_i32_200 = arith.constant 1 : i32
    %503 = arith.addi %0, %c1_i32_200 : i32
    %c25_i32_201 = arith.constant 25 : i32
    %504 = arith.muli %503, %c25_i32_201 : i32
    %c14_i32_202 = arith.constant 14 : i32
    %505 = arith.addi %504, %c14_i32_202 : i32
    %506 = arith.index_cast %505 : i32 to index
    %507 = memref.load %arg3[%506] : memref<100xf32, #tpu.memory_space<smem>>
    %508 = vector.broadcast %507 : f32 to vector<12x12xf32>
    %509 = arith.mulf %494, %508 : vector<12x12xf32>
    %510 = arith.addf %476, %509 : vector<12x12xf32>
    %c2_i32_203 = arith.constant 2 : i32
    %511 = arith.addi %0, %c2_i32_203 : i32
    %c25_i32_204 = arith.constant 25 : i32
    %512 = arith.muli %511, %c25_i32_204 : i32
    %c14_i32_205 = arith.constant 14 : i32
    %513 = arith.addi %512, %c14_i32_205 : i32
    %514 = arith.index_cast %513 : i32 to index
    %515 = memref.load %arg3[%514] : memref<100xf32, #tpu.memory_space<smem>>
    %516 = vector.broadcast %515 : f32 to vector<12x12xf32>
    %517 = arith.mulf %494, %516 : vector<12x12xf32>
    %518 = arith.addf %484, %517 : vector<12x12xf32>
    %c3_i32_206 = arith.constant 3 : i32
    %519 = arith.addi %0, %c3_i32_206 : i32
    %c25_i32_207 = arith.constant 25 : i32
    %520 = arith.muli %519, %c25_i32_207 : i32
    %c14_i32_208 = arith.constant 14 : i32
    %521 = arith.addi %520, %c14_i32_208 : i32
    %522 = arith.index_cast %521 : i32 to index
    %523 = memref.load %arg3[%522] : memref<100xf32, #tpu.memory_space<smem>>
    %524 = vector.broadcast %523 : f32 to vector<12x12xf32>
    %525 = arith.mulf %494, %524 : vector<12x12xf32>
    %526 = arith.addf %492, %525 : vector<12x12xf32>
    %c0_209 = arith.constant 0 : index
    %c3_210 = arith.constant 3 : index
    %c0_211 = arith.constant 0 : index
    %527 = vector.load %arg2[%c0_209, %c3_210, %c0_211] : memref<1x16x16xf32, #tpu.memory_space<vmem>>, vector<1x12x12xf32>
    %528 = vector.shape_cast %527 : vector<1x12x12xf32> to vector<12x12xf32>
    %c0_i32_212 = arith.constant 0 : i32
    %529 = arith.addi %0, %c0_i32_212 : i32
    %c25_i32_213 = arith.constant 25 : i32
    %530 = arith.muli %529, %c25_i32_213 : i32
    %c15_i32 = arith.constant 15 : i32
    %531 = arith.addi %530, %c15_i32 : i32
    %532 = arith.index_cast %531 : i32 to index
    %533 = memref.load %arg3[%532] : memref<100xf32, #tpu.memory_space<smem>>
    %534 = vector.broadcast %533 : f32 to vector<12x12xf32>
    %535 = arith.mulf %528, %534 : vector<12x12xf32>
    %536 = arith.addf %502, %535 : vector<12x12xf32>
    %c1_i32_214 = arith.constant 1 : i32
    %537 = arith.addi %0, %c1_i32_214 : i32
    %c25_i32_215 = arith.constant 25 : i32
    %538 = arith.muli %537, %c25_i32_215 : i32
    %c15_i32_216 = arith.constant 15 : i32
    %539 = arith.addi %538, %c15_i32_216 : i32
    %540 = arith.index_cast %539 : i32 to index
    %541 = memref.load %arg3[%540] : memref<100xf32, #tpu.memory_space<smem>>
    %542 = vector.broadcast %541 : f32 to vector<12x12xf32>
    %543 = arith.mulf %528, %542 : vector<12x12xf32>
    %544 = arith.addf %510, %543 : vector<12x12xf32>
    %c2_i32_217 = arith.constant 2 : i32
    %545 = arith.addi %0, %c2_i32_217 : i32
    %c25_i32_218 = arith.constant 25 : i32
    %546 = arith.muli %545, %c25_i32_218 : i32
    %c15_i32_219 = arith.constant 15 : i32
    %547 = arith.addi %546, %c15_i32_219 : i32
    %548 = arith.index_cast %547 : i32 to index
    %549 = memref.load %arg3[%548] : memref<100xf32, #tpu.memory_space<smem>>
    %550 = vector.broadcast %549 : f32 to vector<12x12xf32>
    %551 = arith.mulf %528, %550 : vector<12x12xf32>
    %552 = arith.addf %518, %551 : vector<12x12xf32>
    %c3_i32_220 = arith.constant 3 : i32
    %553 = arith.addi %0, %c3_i32_220 : i32
    %c25_i32_221 = arith.constant 25 : i32
    %554 = arith.muli %553, %c25_i32_221 : i32
    %c15_i32_222 = arith.constant 15 : i32
    %555 = arith.addi %554, %c15_i32_222 : i32
    %556 = arith.index_cast %555 : i32 to index
    %557 = memref.load %arg3[%556] : memref<100xf32, #tpu.memory_space<smem>>
    %558 = vector.broadcast %557 : f32 to vector<12x12xf32>
    %559 = arith.mulf %528, %558 : vector<12x12xf32>
    %560 = arith.addf %526, %559 : vector<12x12xf32>
    %c0_223 = arith.constant 0 : index
    %c3_224 = arith.constant 3 : index
    %c1_225 = arith.constant 1 : index
    %561 = vector.load %arg2[%c0_223, %c3_224, %c1_225] : memref<1x16x16xf32, #tpu.memory_space<vmem>>, vector<1x12x12xf32>
    %562 = vector.shape_cast %561 : vector<1x12x12xf32> to vector<12x12xf32>
    %c0_i32_226 = arith.constant 0 : i32
    %563 = arith.addi %0, %c0_i32_226 : i32
    %c25_i32_227 = arith.constant 25 : i32
    %564 = arith.muli %563, %c25_i32_227 : i32
    %c16_i32 = arith.constant 16 : i32
    %565 = arith.addi %564, %c16_i32 : i32
    %566 = arith.index_cast %565 : i32 to index
    %567 = memref.load %arg3[%566] : memref<100xf32, #tpu.memory_space<smem>>
    %568 = vector.broadcast %567 : f32 to vector<12x12xf32>
    %569 = arith.mulf %562, %568 : vector<12x12xf32>
    %570 = arith.addf %536, %569 : vector<12x12xf32>
    %c1_i32_228 = arith.constant 1 : i32
    %571 = arith.addi %0, %c1_i32_228 : i32
    %c25_i32_229 = arith.constant 25 : i32
    %572 = arith.muli %571, %c25_i32_229 : i32
    %c16_i32_230 = arith.constant 16 : i32
    %573 = arith.addi %572, %c16_i32_230 : i32
    %574 = arith.index_cast %573 : i32 to index
    %575 = memref.load %arg3[%574] : memref<100xf32, #tpu.memory_space<smem>>
    %576 = vector.broadcast %575 : f32 to vector<12x12xf32>
    %577 = arith.mulf %562, %576 : vector<12x12xf32>
    %578 = arith.addf %544, %577 : vector<12x12xf32>
    %c2_i32_231 = arith.constant 2 : i32
    %579 = arith.addi %0, %c2_i32_231 : i32
    %c25_i32_232 = arith.constant 25 : i32
    %580 = arith.muli %579, %c25_i32_232 : i32
    %c16_i32_233 = arith.constant 16 : i32
    %581 = arith.addi %580, %c16_i32_233 : i32
    %582 = arith.index_cast %581 : i32 to index
    %583 = memref.load %arg3[%582] : memref<100xf32, #tpu.memory_space<smem>>
    %584 = vector.broadcast %583 : f32 to vector<12x12xf32>
    %585 = arith.mulf %562, %584 : vector<12x12xf32>
    %586 = arith.addf %552, %585 : vector<12x12xf32>
    %c3_i32_234 = arith.constant 3 : i32
    %587 = arith.addi %0, %c3_i32_234 : i32
    %c25_i32_235 = arith.constant 25 : i32
    %588 = arith.muli %587, %c25_i32_235 : i32
    %c16_i32_236 = arith.constant 16 : i32
    %589 = arith.addi %588, %c16_i32_236 : i32
    %590 = arith.index_cast %589 : i32 to index
    %591 = memref.load %arg3[%590] : memref<100xf32, #tpu.memory_space<smem>>
    %592 = vector.broadcast %591 : f32 to vector<12x12xf32>
    %593 = arith.mulf %562, %592 : vector<12x12xf32>
    %594 = arith.addf %560, %593 : vector<12x12xf32>
    %c0_237 = arith.constant 0 : index
    %c3_238 = arith.constant 3 : index
    %c2_239 = arith.constant 2 : index
    %595 = vector.load %arg2[%c0_237, %c3_238, %c2_239] : memref<1x16x16xf32, #tpu.memory_space<vmem>>, vector<1x12x12xf32>
    %596 = vector.shape_cast %595 : vector<1x12x12xf32> to vector<12x12xf32>
    %c0_i32_240 = arith.constant 0 : i32
    %597 = arith.addi %0, %c0_i32_240 : i32
    %c25_i32_241 = arith.constant 25 : i32
    %598 = arith.muli %597, %c25_i32_241 : i32
    %c17_i32 = arith.constant 17 : i32
    %599 = arith.addi %598, %c17_i32 : i32
    %600 = arith.index_cast %599 : i32 to index
    %601 = memref.load %arg3[%600] : memref<100xf32, #tpu.memory_space<smem>>
    %602 = vector.broadcast %601 : f32 to vector<12x12xf32>
    %603 = arith.mulf %596, %602 : vector<12x12xf32>
    %604 = arith.addf %570, %603 : vector<12x12xf32>
    %c1_i32_242 = arith.constant 1 : i32
    %605 = arith.addi %0, %c1_i32_242 : i32
    %c25_i32_243 = arith.constant 25 : i32
    %606 = arith.muli %605, %c25_i32_243 : i32
    %c17_i32_244 = arith.constant 17 : i32
    %607 = arith.addi %606, %c17_i32_244 : i32
    %608 = arith.index_cast %607 : i32 to index
    %609 = memref.load %arg3[%608] : memref<100xf32, #tpu.memory_space<smem>>
    %610 = vector.broadcast %609 : f32 to vector<12x12xf32>
    %611 = arith.mulf %596, %610 : vector<12x12xf32>
    %612 = arith.addf %578, %611 : vector<12x12xf32>
    %c2_i32_245 = arith.constant 2 : i32
    %613 = arith.addi %0, %c2_i32_245 : i32
    %c25_i32_246 = arith.constant 25 : i32
    %614 = arith.muli %613, %c25_i32_246 : i32
    %c17_i32_247 = arith.constant 17 : i32
    %615 = arith.addi %614, %c17_i32_247 : i32
    %616 = arith.index_cast %615 : i32 to index
    %617 = memref.load %arg3[%616] : memref<100xf32, #tpu.memory_space<smem>>
    %618 = vector.broadcast %617 : f32 to vector<12x12xf32>
    %619 = arith.mulf %596, %618 : vector<12x12xf32>
    %620 = arith.addf %586, %619 : vector<12x12xf32>
    %c3_i32_248 = arith.constant 3 : i32
    %621 = arith.addi %0, %c3_i32_248 : i32
    %c25_i32_249 = arith.constant 25 : i32
    %622 = arith.muli %621, %c25_i32_249 : i32
    %c17_i32_250 = arith.constant 17 : i32
    %623 = arith.addi %622, %c17_i32_250 : i32
    %624 = arith.index_cast %623 : i32 to index
    %625 = memref.load %arg3[%624] : memref<100xf32, #tpu.memory_space<smem>>
    %626 = vector.broadcast %625 : f32 to vector<12x12xf32>
    %627 = arith.mulf %596, %626 : vector<12x12xf32>
    %628 = arith.addf %594, %627 : vector<12x12xf32>
    %c0_251 = arith.constant 0 : index
    %c3_252 = arith.constant 3 : index
    %c3_253 = arith.constant 3 : index
    %629 = vector.load %arg2[%c0_251, %c3_252, %c3_253] : memref<1x16x16xf32, #tpu.memory_space<vmem>>, vector<1x12x12xf32>
    %630 = vector.shape_cast %629 : vector<1x12x12xf32> to vector<12x12xf32>
    %c0_i32_254 = arith.constant 0 : i32
    %631 = arith.addi %0, %c0_i32_254 : i32
    %c25_i32_255 = arith.constant 25 : i32
    %632 = arith.muli %631, %c25_i32_255 : i32
    %c18_i32 = arith.constant 18 : i32
    %633 = arith.addi %632, %c18_i32 : i32
    %634 = arith.index_cast %633 : i32 to index
    %635 = memref.load %arg3[%634] : memref<100xf32, #tpu.memory_space<smem>>
    %636 = vector.broadcast %635 : f32 to vector<12x12xf32>
    %637 = arith.mulf %630, %636 : vector<12x12xf32>
    %638 = arith.addf %604, %637 : vector<12x12xf32>
    %c1_i32_256 = arith.constant 1 : i32
    %639 = arith.addi %0, %c1_i32_256 : i32
    %c25_i32_257 = arith.constant 25 : i32
    %640 = arith.muli %639, %c25_i32_257 : i32
    %c18_i32_258 = arith.constant 18 : i32
    %641 = arith.addi %640, %c18_i32_258 : i32
    %642 = arith.index_cast %641 : i32 to index
    %643 = memref.load %arg3[%642] : memref<100xf32, #tpu.memory_space<smem>>
    %644 = vector.broadcast %643 : f32 to vector<12x12xf32>
    %645 = arith.mulf %630, %644 : vector<12x12xf32>
    %646 = arith.addf %612, %645 : vector<12x12xf32>
    %c2_i32_259 = arith.constant 2 : i32
    %647 = arith.addi %0, %c2_i32_259 : i32
    %c25_i32_260 = arith.constant 25 : i32
    %648 = arith.muli %647, %c25_i32_260 : i32
    %c18_i32_261 = arith.constant 18 : i32
    %649 = arith.addi %648, %c18_i32_261 : i32
    %650 = arith.index_cast %649 : i32 to index
    %651 = memref.load %arg3[%650] : memref<100xf32, #tpu.memory_space<smem>>
    %652 = vector.broadcast %651 : f32 to vector<12x12xf32>
    %653 = arith.mulf %630, %652 : vector<12x12xf32>
    %654 = arith.addf %620, %653 : vector<12x12xf32>
    %c3_i32_262 = arith.constant 3 : i32
    %655 = arith.addi %0, %c3_i32_262 : i32
    %c25_i32_263 = arith.constant 25 : i32
    %656 = arith.muli %655, %c25_i32_263 : i32
    %c18_i32_264 = arith.constant 18 : i32
    %657 = arith.addi %656, %c18_i32_264 : i32
    %658 = arith.index_cast %657 : i32 to index
    %659 = memref.load %arg3[%658] : memref<100xf32, #tpu.memory_space<smem>>
    %660 = vector.broadcast %659 : f32 to vector<12x12xf32>
    %661 = arith.mulf %630, %660 : vector<12x12xf32>
    %662 = arith.addf %628, %661 : vector<12x12xf32>
    %c0_265 = arith.constant 0 : index
    %c3_266 = arith.constant 3 : index
    %c4_267 = arith.constant 4 : index
    %663 = vector.load %arg2[%c0_265, %c3_266, %c4_267] : memref<1x16x16xf32, #tpu.memory_space<vmem>>, vector<1x12x12xf32>
    %664 = vector.shape_cast %663 : vector<1x12x12xf32> to vector<12x12xf32>
    %c0_i32_268 = arith.constant 0 : i32
    %665 = arith.addi %0, %c0_i32_268 : i32
    %c25_i32_269 = arith.constant 25 : i32
    %666 = arith.muli %665, %c25_i32_269 : i32
    %c19_i32 = arith.constant 19 : i32
    %667 = arith.addi %666, %c19_i32 : i32
    %668 = arith.index_cast %667 : i32 to index
    %669 = memref.load %arg3[%668] : memref<100xf32, #tpu.memory_space<smem>>
    %670 = vector.broadcast %669 : f32 to vector<12x12xf32>
    %671 = arith.mulf %664, %670 : vector<12x12xf32>
    %672 = arith.addf %638, %671 : vector<12x12xf32>
    %c1_i32_270 = arith.constant 1 : i32
    %673 = arith.addi %0, %c1_i32_270 : i32
    %c25_i32_271 = arith.constant 25 : i32
    %674 = arith.muli %673, %c25_i32_271 : i32
    %c19_i32_272 = arith.constant 19 : i32
    %675 = arith.addi %674, %c19_i32_272 : i32
    %676 = arith.index_cast %675 : i32 to index
    %677 = memref.load %arg3[%676] : memref<100xf32, #tpu.memory_space<smem>>
    %678 = vector.broadcast %677 : f32 to vector<12x12xf32>
    %679 = arith.mulf %664, %678 : vector<12x12xf32>
    %680 = arith.addf %646, %679 : vector<12x12xf32>
    %c2_i32_273 = arith.constant 2 : i32
    %681 = arith.addi %0, %c2_i32_273 : i32
    %c25_i32_274 = arith.constant 25 : i32
    %682 = arith.muli %681, %c25_i32_274 : i32
    %c19_i32_275 = arith.constant 19 : i32
    %683 = arith.addi %682, %c19_i32_275 : i32
    %684 = arith.index_cast %683 : i32 to index
    %685 = memref.load %arg3[%684] : memref<100xf32, #tpu.memory_space<smem>>
    %686 = vector.broadcast %685 : f32 to vector<12x12xf32>
    %687 = arith.mulf %664, %686 : vector<12x12xf32>
    %688 = arith.addf %654, %687 : vector<12x12xf32>
    %c3_i32_276 = arith.constant 3 : i32
    %689 = arith.addi %0, %c3_i32_276 : i32
    %c25_i32_277 = arith.constant 25 : i32
    %690 = arith.muli %689, %c25_i32_277 : i32
    %c19_i32_278 = arith.constant 19 : i32
    %691 = arith.addi %690, %c19_i32_278 : i32
    %692 = arith.index_cast %691 : i32 to index
    %693 = memref.load %arg3[%692] : memref<100xf32, #tpu.memory_space<smem>>
    %694 = vector.broadcast %693 : f32 to vector<12x12xf32>
    %695 = arith.mulf %664, %694 : vector<12x12xf32>
    %696 = arith.addf %662, %695 : vector<12x12xf32>
    %c0_279 = arith.constant 0 : index
    %c4_280 = arith.constant 4 : index
    %c0_281 = arith.constant 0 : index
    %697 = vector.load %arg2[%c0_279, %c4_280, %c0_281] : memref<1x16x16xf32, #tpu.memory_space<vmem>>, vector<1x12x12xf32>
    %698 = vector.shape_cast %697 : vector<1x12x12xf32> to vector<12x12xf32>
    %c0_i32_282 = arith.constant 0 : i32
    %699 = arith.addi %0, %c0_i32_282 : i32
    %c25_i32_283 = arith.constant 25 : i32
    %700 = arith.muli %699, %c25_i32_283 : i32
    %c20_i32 = arith.constant 20 : i32
    %701 = arith.addi %700, %c20_i32 : i32
    %702 = arith.index_cast %701 : i32 to index
    %703 = memref.load %arg3[%702] : memref<100xf32, #tpu.memory_space<smem>>
    %704 = vector.broadcast %703 : f32 to vector<12x12xf32>
    %705 = arith.mulf %698, %704 : vector<12x12xf32>
    %706 = arith.addf %672, %705 : vector<12x12xf32>
    %c1_i32_284 = arith.constant 1 : i32
    %707 = arith.addi %0, %c1_i32_284 : i32
    %c25_i32_285 = arith.constant 25 : i32
    %708 = arith.muli %707, %c25_i32_285 : i32
    %c20_i32_286 = arith.constant 20 : i32
    %709 = arith.addi %708, %c20_i32_286 : i32
    %710 = arith.index_cast %709 : i32 to index
    %711 = memref.load %arg3[%710] : memref<100xf32, #tpu.memory_space<smem>>
    %712 = vector.broadcast %711 : f32 to vector<12x12xf32>
    %713 = arith.mulf %698, %712 : vector<12x12xf32>
    %714 = arith.addf %680, %713 : vector<12x12xf32>
    %c2_i32_287 = arith.constant 2 : i32
    %715 = arith.addi %0, %c2_i32_287 : i32
    %c25_i32_288 = arith.constant 25 : i32
    %716 = arith.muli %715, %c25_i32_288 : i32
    %c20_i32_289 = arith.constant 20 : i32
    %717 = arith.addi %716, %c20_i32_289 : i32
    %718 = arith.index_cast %717 : i32 to index
    %719 = memref.load %arg3[%718] : memref<100xf32, #tpu.memory_space<smem>>
    %720 = vector.broadcast %719 : f32 to vector<12x12xf32>
    %721 = arith.mulf %698, %720 : vector<12x12xf32>
    %722 = arith.addf %688, %721 : vector<12x12xf32>
    %c3_i32_290 = arith.constant 3 : i32
    %723 = arith.addi %0, %c3_i32_290 : i32
    %c25_i32_291 = arith.constant 25 : i32
    %724 = arith.muli %723, %c25_i32_291 : i32
    %c20_i32_292 = arith.constant 20 : i32
    %725 = arith.addi %724, %c20_i32_292 : i32
    %726 = arith.index_cast %725 : i32 to index
    %727 = memref.load %arg3[%726] : memref<100xf32, #tpu.memory_space<smem>>
    %728 = vector.broadcast %727 : f32 to vector<12x12xf32>
    %729 = arith.mulf %698, %728 : vector<12x12xf32>
    %730 = arith.addf %696, %729 : vector<12x12xf32>
    %c0_293 = arith.constant 0 : index
    %c4_294 = arith.constant 4 : index
    %c1_295 = arith.constant 1 : index
    %731 = vector.load %arg2[%c0_293, %c4_294, %c1_295] : memref<1x16x16xf32, #tpu.memory_space<vmem>>, vector<1x12x12xf32>
    %732 = vector.shape_cast %731 : vector<1x12x12xf32> to vector<12x12xf32>
    %c0_i32_296 = arith.constant 0 : i32
    %733 = arith.addi %0, %c0_i32_296 : i32
    %c25_i32_297 = arith.constant 25 : i32
    %734 = arith.muli %733, %c25_i32_297 : i32
    %c21_i32 = arith.constant 21 : i32
    %735 = arith.addi %734, %c21_i32 : i32
    %736 = arith.index_cast %735 : i32 to index
    %737 = memref.load %arg3[%736] : memref<100xf32, #tpu.memory_space<smem>>
    %738 = vector.broadcast %737 : f32 to vector<12x12xf32>
    %739 = arith.mulf %732, %738 : vector<12x12xf32>
    %740 = arith.addf %706, %739 : vector<12x12xf32>
    %c1_i32_298 = arith.constant 1 : i32
    %741 = arith.addi %0, %c1_i32_298 : i32
    %c25_i32_299 = arith.constant 25 : i32
    %742 = arith.muli %741, %c25_i32_299 : i32
    %c21_i32_300 = arith.constant 21 : i32
    %743 = arith.addi %742, %c21_i32_300 : i32
    %744 = arith.index_cast %743 : i32 to index
    %745 = memref.load %arg3[%744] : memref<100xf32, #tpu.memory_space<smem>>
    %746 = vector.broadcast %745 : f32 to vector<12x12xf32>
    %747 = arith.mulf %732, %746 : vector<12x12xf32>
    %748 = arith.addf %714, %747 : vector<12x12xf32>
    %c2_i32_301 = arith.constant 2 : i32
    %749 = arith.addi %0, %c2_i32_301 : i32
    %c25_i32_302 = arith.constant 25 : i32
    %750 = arith.muli %749, %c25_i32_302 : i32
    %c21_i32_303 = arith.constant 21 : i32
    %751 = arith.addi %750, %c21_i32_303 : i32
    %752 = arith.index_cast %751 : i32 to index
    %753 = memref.load %arg3[%752] : memref<100xf32, #tpu.memory_space<smem>>
    %754 = vector.broadcast %753 : f32 to vector<12x12xf32>
    %755 = arith.mulf %732, %754 : vector<12x12xf32>
    %756 = arith.addf %722, %755 : vector<12x12xf32>
    %c3_i32_304 = arith.constant 3 : i32
    %757 = arith.addi %0, %c3_i32_304 : i32
    %c25_i32_305 = arith.constant 25 : i32
    %758 = arith.muli %757, %c25_i32_305 : i32
    %c21_i32_306 = arith.constant 21 : i32
    %759 = arith.addi %758, %c21_i32_306 : i32
    %760 = arith.index_cast %759 : i32 to index
    %761 = memref.load %arg3[%760] : memref<100xf32, #tpu.memory_space<smem>>
    %762 = vector.broadcast %761 : f32 to vector<12x12xf32>
    %763 = arith.mulf %732, %762 : vector<12x12xf32>
    %764 = arith.addf %730, %763 : vector<12x12xf32>
    %c0_307 = arith.constant 0 : index
    %c4_308 = arith.constant 4 : index
    %c2_309 = arith.constant 2 : index
    %765 = vector.load %arg2[%c0_307, %c4_308, %c2_309] : memref<1x16x16xf32, #tpu.memory_space<vmem>>, vector<1x12x12xf32>
    %766 = vector.shape_cast %765 : vector<1x12x12xf32> to vector<12x12xf32>
    %c0_i32_310 = arith.constant 0 : i32
    %767 = arith.addi %0, %c0_i32_310 : i32
    %c25_i32_311 = arith.constant 25 : i32
    %768 = arith.muli %767, %c25_i32_311 : i32
    %c22_i32 = arith.constant 22 : i32
    %769 = arith.addi %768, %c22_i32 : i32
    %770 = arith.index_cast %769 : i32 to index
    %771 = memref.load %arg3[%770] : memref<100xf32, #tpu.memory_space<smem>>
    %772 = vector.broadcast %771 : f32 to vector<12x12xf32>
    %773 = arith.mulf %766, %772 : vector<12x12xf32>
    %774 = arith.addf %740, %773 : vector<12x12xf32>
    %c1_i32_312 = arith.constant 1 : i32
    %775 = arith.addi %0, %c1_i32_312 : i32
    %c25_i32_313 = arith.constant 25 : i32
    %776 = arith.muli %775, %c25_i32_313 : i32
    %c22_i32_314 = arith.constant 22 : i32
    %777 = arith.addi %776, %c22_i32_314 : i32
    %778 = arith.index_cast %777 : i32 to index
    %779 = memref.load %arg3[%778] : memref<100xf32, #tpu.memory_space<smem>>
    %780 = vector.broadcast %779 : f32 to vector<12x12xf32>
    %781 = arith.mulf %766, %780 : vector<12x12xf32>
    %782 = arith.addf %748, %781 : vector<12x12xf32>
    %c2_i32_315 = arith.constant 2 : i32
    %783 = arith.addi %0, %c2_i32_315 : i32
    %c25_i32_316 = arith.constant 25 : i32
    %784 = arith.muli %783, %c25_i32_316 : i32
    %c22_i32_317 = arith.constant 22 : i32
    %785 = arith.addi %784, %c22_i32_317 : i32
    %786 = arith.index_cast %785 : i32 to index
    %787 = memref.load %arg3[%786] : memref<100xf32, #tpu.memory_space<smem>>
    %788 = vector.broadcast %787 : f32 to vector<12x12xf32>
    %789 = arith.mulf %766, %788 : vector<12x12xf32>
    %790 = arith.addf %756, %789 : vector<12x12xf32>
    %c3_i32_318 = arith.constant 3 : i32
    %791 = arith.addi %0, %c3_i32_318 : i32
    %c25_i32_319 = arith.constant 25 : i32
    %792 = arith.muli %791, %c25_i32_319 : i32
    %c22_i32_320 = arith.constant 22 : i32
    %793 = arith.addi %792, %c22_i32_320 : i32
    %794 = arith.index_cast %793 : i32 to index
    %795 = memref.load %arg3[%794] : memref<100xf32, #tpu.memory_space<smem>>
    %796 = vector.broadcast %795 : f32 to vector<12x12xf32>
    %797 = arith.mulf %766, %796 : vector<12x12xf32>
    %798 = arith.addf %764, %797 : vector<12x12xf32>
    %c0_321 = arith.constant 0 : index
    %c4_322 = arith.constant 4 : index
    %c3_323 = arith.constant 3 : index
    %799 = vector.load %arg2[%c0_321, %c4_322, %c3_323] : memref<1x16x16xf32, #tpu.memory_space<vmem>>, vector<1x12x12xf32>
    %800 = vector.shape_cast %799 : vector<1x12x12xf32> to vector<12x12xf32>
    %c0_i32_324 = arith.constant 0 : i32
    %801 = arith.addi %0, %c0_i32_324 : i32
    %c25_i32_325 = arith.constant 25 : i32
    %802 = arith.muli %801, %c25_i32_325 : i32
    %c23_i32 = arith.constant 23 : i32
    %803 = arith.addi %802, %c23_i32 : i32
    %804 = arith.index_cast %803 : i32 to index
    %805 = memref.load %arg3[%804] : memref<100xf32, #tpu.memory_space<smem>>
    %806 = vector.broadcast %805 : f32 to vector<12x12xf32>
    %807 = arith.mulf %800, %806 : vector<12x12xf32>
    %808 = arith.addf %774, %807 : vector<12x12xf32>
    %c1_i32_326 = arith.constant 1 : i32
    %809 = arith.addi %0, %c1_i32_326 : i32
    %c25_i32_327 = arith.constant 25 : i32
    %810 = arith.muli %809, %c25_i32_327 : i32
    %c23_i32_328 = arith.constant 23 : i32
    %811 = arith.addi %810, %c23_i32_328 : i32
    %812 = arith.index_cast %811 : i32 to index
    %813 = memref.load %arg3[%812] : memref<100xf32, #tpu.memory_space<smem>>
    %814 = vector.broadcast %813 : f32 to vector<12x12xf32>
    %815 = arith.mulf %800, %814 : vector<12x12xf32>
    %816 = arith.addf %782, %815 : vector<12x12xf32>
    %c2_i32_329 = arith.constant 2 : i32
    %817 = arith.addi %0, %c2_i32_329 : i32
    %c25_i32_330 = arith.constant 25 : i32
    %818 = arith.muli %817, %c25_i32_330 : i32
    %c23_i32_331 = arith.constant 23 : i32
    %819 = arith.addi %818, %c23_i32_331 : i32
    %820 = arith.index_cast %819 : i32 to index
    %821 = memref.load %arg3[%820] : memref<100xf32, #tpu.memory_space<smem>>
    %822 = vector.broadcast %821 : f32 to vector<12x12xf32>
    %823 = arith.mulf %800, %822 : vector<12x12xf32>
    %824 = arith.addf %790, %823 : vector<12x12xf32>
    %c3_i32_332 = arith.constant 3 : i32
    %825 = arith.addi %0, %c3_i32_332 : i32
    %c25_i32_333 = arith.constant 25 : i32
    %826 = arith.muli %825, %c25_i32_333 : i32
    %c23_i32_334 = arith.constant 23 : i32
    %827 = arith.addi %826, %c23_i32_334 : i32
    %828 = arith.index_cast %827 : i32 to index
    %829 = memref.load %arg3[%828] : memref<100xf32, #tpu.memory_space<smem>>
    %830 = vector.broadcast %829 : f32 to vector<12x12xf32>
    %831 = arith.mulf %800, %830 : vector<12x12xf32>
    %832 = arith.addf %798, %831 : vector<12x12xf32>
    %c0_335 = arith.constant 0 : index
    %c4_336 = arith.constant 4 : index
    %c4_337 = arith.constant 4 : index
    %833 = vector.load %arg2[%c0_335, %c4_336, %c4_337] : memref<1x16x16xf32, #tpu.memory_space<vmem>>, vector<1x12x12xf32>
    %834 = vector.shape_cast %833 : vector<1x12x12xf32> to vector<12x12xf32>
    %c0_i32_338 = arith.constant 0 : i32
    %835 = arith.addi %0, %c0_i32_338 : i32
    %c25_i32_339 = arith.constant 25 : i32
    %836 = arith.muli %835, %c25_i32_339 : i32
    %c24_i32 = arith.constant 24 : i32
    %837 = arith.addi %836, %c24_i32 : i32
    %838 = arith.index_cast %837 : i32 to index
    %839 = memref.load %arg3[%838] : memref<100xf32, #tpu.memory_space<smem>>
    %840 = vector.broadcast %839 : f32 to vector<12x12xf32>
    %841 = arith.mulf %834, %840 : vector<12x12xf32>
    %842 = arith.addf %808, %841 : vector<12x12xf32>
    %c1_i32_340 = arith.constant 1 : i32
    %843 = arith.addi %0, %c1_i32_340 : i32
    %c25_i32_341 = arith.constant 25 : i32
    %844 = arith.muli %843, %c25_i32_341 : i32
    %c24_i32_342 = arith.constant 24 : i32
    %845 = arith.addi %844, %c24_i32_342 : i32
    %846 = arith.index_cast %845 : i32 to index
    %847 = memref.load %arg3[%846] : memref<100xf32, #tpu.memory_space<smem>>
    %848 = vector.broadcast %847 : f32 to vector<12x12xf32>
    %849 = arith.mulf %834, %848 : vector<12x12xf32>
    %850 = arith.addf %816, %849 : vector<12x12xf32>
    %c2_i32_343 = arith.constant 2 : i32
    %851 = arith.addi %0, %c2_i32_343 : i32
    %c25_i32_344 = arith.constant 25 : i32
    %852 = arith.muli %851, %c25_i32_344 : i32
    %c24_i32_345 = arith.constant 24 : i32
    %853 = arith.addi %852, %c24_i32_345 : i32
    %854 = arith.index_cast %853 : i32 to index
    %855 = memref.load %arg3[%854] : memref<100xf32, #tpu.memory_space<smem>>
    %856 = vector.broadcast %855 : f32 to vector<12x12xf32>
    %857 = arith.mulf %834, %856 : vector<12x12xf32>
    %858 = arith.addf %824, %857 : vector<12x12xf32>
    %c3_i32_346 = arith.constant 3 : i32
    %859 = arith.addi %0, %c3_i32_346 : i32
    %c25_i32_347 = arith.constant 25 : i32
    %860 = arith.muli %859, %c25_i32_347 : i32
    %c24_i32_348 = arith.constant 24 : i32
    %861 = arith.addi %860, %c24_i32_348 : i32
    %862 = arith.index_cast %861 : i32 to index
    %863 = memref.load %arg3[%862] : memref<100xf32, #tpu.memory_space<smem>>
    %864 = vector.broadcast %863 : f32 to vector<12x12xf32>
    %865 = arith.mulf %834, %864 : vector<12x12xf32>
    %866 = arith.addf %832, %865 : vector<12x12xf32>
    %cst = arith.constant 0.000000e+00 : f32
    %867 = vector.broadcast %cst : f32 to vector<12x12xf32>
    %868 = arith.maximumf %842, %867 : vector<12x12xf32>
    %c0_349 = arith.constant 0 : index
    %c0_350 = arith.constant 0 : index
    %c0_351 = arith.constant 0 : index
    %c0_352 = arith.constant 0 : index
    %869 = vector.load %arg5[%c0_349, %c0_350, %c0_351, %c0_352] : memref<1x4x12x12xf32, #tpu.memory_space<vmem>>, vector<1x1x12x12xf32>
    %870 = vector.shape_cast %869 : vector<1x1x12x12xf32> to vector<12x12xf32>
    %871 = vector.shape_cast %868 : vector<12x12xf32> to vector<1x1x12x12xf32>
    tpu.vector_store %arg5[%c0_349, %c0_350, %c0_351, %c0_352], %871 {strides = array<i32>} : memref<1x4x12x12xf32, #tpu.memory_space<vmem>>, vector<1x1x12x12xf32>,
    %cst_353 = arith.constant 0.000000e+00 : f32
    %872 = vector.broadcast %cst_353 : f32 to vector<12x12xf32>
    %873 = arith.maximumf %850, %872 : vector<12x12xf32>
    %c0_354 = arith.constant 0 : index
    %c1_355 = arith.constant 1 : index
    %c0_356 = arith.constant 0 : index
    %c0_357 = arith.constant 0 : index
    %874 = vector.load %arg5[%c0_354, %c1_355, %c0_356, %c0_357] : memref<1x4x12x12xf32, #tpu.memory_space<vmem>>, vector<1x1x12x12xf32>
    %875 = vector.shape_cast %874 : vector<1x1x12x12xf32> to vector<12x12xf32>
    %876 = vector.shape_cast %873 : vector<12x12xf32> to vector<1x1x12x12xf32>
    tpu.vector_store %arg5[%c0_354, %c1_355, %c0_356, %c0_357], %876 {strides = array<i32>} : memref<1x4x12x12xf32, #tpu.memory_space<vmem>>, vector<1x1x12x12xf32>,
    %cst_358 = arith.constant 0.000000e+00 : f32
    %877 = vector.broadcast %cst_358 : f32 to vector<12x12xf32>
    %878 = arith.maximumf %858, %877 : vector<12x12xf32>
    %c0_359 = arith.constant 0 : index
    %c2_360 = arith.constant 2 : index
    %c0_361 = arith.constant 0 : index
    %c0_362 = arith.constant 0 : index
    %879 = vector.load %arg5[%c0_359, %c2_360, %c0_361, %c0_362] : memref<1x4x12x12xf32, #tpu.memory_space<vmem>>, vector<1x1x12x12xf32>
    %880 = vector.shape_cast %879 : vector<1x1x12x12xf32> to vector<12x12xf32>
    %881 = vector.shape_cast %878 : vector<12x12xf32> to vector<1x1x12x12xf32>
    tpu.vector_store %arg5[%c0_359, %c2_360, %c0_361, %c0_362], %881 {strides = array<i32>} : memref<1x4x12x12xf32, #tpu.memory_space<vmem>>, vector<1x1x12x12xf32>,
    %cst_363 = arith.constant 0.000000e+00 : f32
    %882 = vector.broadcast %cst_363 : f32 to vector<12x12xf32>
    %883 = arith.maximumf %866, %882 : vector<12x12xf32>
    %c0_364 = arith.constant 0 : index
    %c3_365 = arith.constant 3 : index
    %c0_366 = arith.constant 0 : index
    %c0_367 = arith.constant 0 : index
    %884 = vector.load %arg5[%c0_364, %c3_365, %c0_366, %c0_367] : memref<1x4x12x12xf32, #tpu.memory_space<vmem>>, vector<1x1x12x12xf32>
    %885 = vector.shape_cast %884 : vector<1x1x12x12xf32> to vector<12x12xf32>
    %886 = vector.shape_cast %883 : vector<12x12xf32> to vector<1x1x12x12xf32>
    tpu.vector_store %arg5[%c0_364, %c3_365, %c0_366, %c0_367], %886 {strides = array<i32>} : memref<1x4x12x12xf32, #tpu.memory_space<vmem>>, vector<1x1x12x12xf32>,
    return
  }
  func.func @transform_0(%arg0: i32, %arg1: i32) -> (i32, i32, i32) {
    %c0_i32 = arith.constant 0 : i32
    %c0_i32_0 = arith.constant 0 : i32
    %c0_i32_1 = arith.constant 0 : i32
    return %arg0, %c0_i32, %c0_i32_0 : i32, i32, i32
  }
  func.func @transform_1(%arg0: i32, %arg1: i32) -> i32 {
    %c0_i32 = arith.constant 0 : i32
    %c0_i32_0 = arith.constant 0 : i32
    return %c0_i32 : i32
  }
  func.func @transform_2(%arg0: i32, %arg1: i32) -> i32 {
    %c0_i32 = arith.constant 0 : i32
    %c0_i32_0 = arith.constant 0 : i32
    return %c0_i32 : i32
  }
  func.func @transform_3(%arg0: i32, %arg1: i32) -> (i32, i32, i32, i32) {
    %c0_i32 = arith.constant 0 : i32
    %c0_i32_0 = arith.constant 0 : i32
    %c0_i32_1 = arith.constant 0 : i32
    return %arg0, %arg1, %c0_i32, %c0_i32_0 : i32, i32, i32, i32
  }
}

</mosaic_0001>

<llo_original>
// kernel: gabor_layer_forward.1
$region0: #{gabor_layer_forward.1}
  #allocation0 [shape = 'u32[]', space=smem, size = 0x4, offset = 0x4, fixed_abs, tag = 'smem constant byte address 0x4 - core index']
  #allocation1 [shape = 'u32[144,128]{1,0:T(1,128)}', space=vmem, size = 0x12000, scoped, tag = 'internal scratch']
  %s0 = inlined_call_operand.vmem [shape: f32[2,16,16], index: 0, kind: input, shape index: {}]
  %s1 = inlined_call_operand.vmem [shape: f32[100], index: 1, kind: input, shape index: {}]
  %s2 = inlined_call_operand.vmem [shape: f32[4], index: 2, kind: input, shape index: {}]
  %s3 = inlined_call_operand.vmem [shape: f32[2,4,12,12], index: 3, kind: output, shape index: {}]
  %s4 = sld [smem:[#allocation0]]
  $region53: #{gabor_layer_forward.1} parent=0
    _
  %s6 = ssub.s32 1, %s4
  %s7 = scalar_select 0, %s6, %s4
  $region1: #{gabor_layer_forward.1} parent=0
    #allocation2 [shape = 'u8[512]{0}', space=smem, size = 0x200, scoped, tag = 'input window, operand 1, single buffered']
    #allocation3 [shape = 's32[2]{0}', space=sflag, size = 0x8, scoped, tag = 'scoped memory for gabor_layer_forward.1']
    #allocation4 [shape = 'u8[512]{0}', space=smem, size = 0x200, scoped, tag = 'input window, operand 2, single buffered']
    #allocation5 [shape = 's32[1]{0}', space=sflag, size = 0x4, scoped, tag = 'scoped memory for gabor_layer_forward.1']
    %8 = vsyncpa [#allocation3], 0
    %9 = vsyncpa [#allocation5], 0
    loop: start=0, step=1, limit=4
    $region2: #{gabor_layer_forward.1} parent=1 // loop_pre_header
      _
    $region3: #{gabor_layer_forward.1} parent=1 // loop_header
      %s11 = sphi 0, %s15
      %p12 = scmp.ge.s32.totalorder %s11, 4
      %s18 = sphi 0, %s30
      %s19 = sphi 0, %s26
      %s20 = sphi 0, %s18
      %s21 = sphi 0, %s19
      %s22 = sphi 0, %s20
      %s23 = sphi 0, %s21
      %s33 = sphi 0, %s35
      %s36 = sphi 0, %s33
      %s37 = sphi 0, %s36
      %s53 = sphi 0, %s37
      %s57 = sphi 0, %s57
      %s59 = sphi 0, %s57
      %s60 = sphi 0, %s59
      %s74 = sphi 0, %s60
      %s78 = sphi 0, %s78
      %s80 = sphi 0, %s78
      %s81 = sphi 0, %s80
      %s95 = sphi 0, %s81
      %s103 = sphi 0, %s105
      %s106 = sphi 0, %s103
      %s107 = sphi 0, %s106
      %s123 = sphi 0, %s107
    $region4: #{gabor_layer_forward.1} parent=1 // loop_header_branch
      %14 = sbr.rel (%p12) target = $region8
    $region5: #{gabor_layer_forward.1} parent=1 // loop_body
      %s16 = ssub.s32 %s11, 1
      %s17 = ssub.s32 %s11, 2
      %s24 = sadd.s32 1, %s19
      %p25 = scmp.ge.s32.totalorder %s24, 1
      %s26 = scalar_select %p25, 0, %s24
      %s27 = sadd.s32 1, %s18
      %s28 = scalar_select %p25, %s27, %s18
      %p29 = scmp.ge.s32.totalorder %s28, 2
      %s30 = scalar_select %p29, 0, %s28
      %s31 = ssub.s32 %s18, %s30
      %p32 = scmp.eq.s32.totalorder %s31, 0
      %s34 = sadd.s32 %s33, 1
      %s35 = scalar_select %p32, %s33, %s34
      %p38 = pneg %p32
      %p39 = scmp.eq.s32.totalorder %s11, 1
      %p40 = por %p38, %p39
      %p41 = scmp.ne.s32.totalorder %s33, %s36
      %p42 = scmp.eq.s32.totalorder %s11, 0
      %p43 = por %p41, %p42
      %p44 = scmp.ne.s32.totalorder %s33, %s36
      %p45 = scmp.eq.s32.totalorder %s16, 1
      %p46 = por %p44, %p45
      %p47 = scmp.ne.s32.totalorder %s36, %s37
      %p48 = scmp.eq.s32.totalorder %s16, 0
      %p49 = por %p47, %p48
      %p50 = scmp.ne.s32.totalorder %s36, %s37
      %p51 = scmp.eq.s32.totalorder %s17, 1
      %p52 = por %p50, %p51
      %p54 = scmp.ne.s32.totalorder %s37, %s53
      %p55 = scmp.eq.s32.totalorder %s17, 0
      %p56 = por %p54, %p55
      %s58 = sadd.s32 %s57, 1
      %p61 = scmp.eq.s32.totalorder %s11, 1
      %p62 = scmp.ne.s32.totalorder %s57, %s59
      %p63 = scmp.eq.s32.totalorder %s11, 0
      %p64 = por %p62, %p63
      %p65 = scmp.ne.s32.totalorder %s57, %s59
      %p66 = scmp.eq.s32.totalorder %s16, 1
      %p67 = por %p65, %p66
      %p68 = scmp.ne.s32.totalorder %s59, %s60
      %p69 = scmp.eq.s32.totalorder %s16, 0
      %p70 = por %p68, %p69
      %p71 = scmp.ne.s32.totalorder %s59, %s60
      %p72 = scmp.eq.s32.totalorder %s17, 1
      %p73 = por %p71, %p72
      %p75 = scmp.ne.s32.totalorder %s60, %s74
      %p76 = scmp.eq.s32.totalorder %s17, 0
      %p77 = por %p75, %p76
      %s79 = sadd.s32 %s78, 1
      %p82 = scmp.eq.s32.totalorder %s11, 1
      %p83 = scmp.ne.s32.totalorder %s78, %s80
      %p84 = scmp.eq.s32.totalorder %s11, 0
      %p85 = por %p83, %p84
      %p86 = scmp.ne.s32.totalorder %s78, %s80
      %p87 = scmp.eq.s32.totalorder %s16, 1
      %p88 = por %p86, %p87
      %p89 = scmp.ne.s32.totalorder %s80, %s81
      %p90 = scmp.eq.s32.totalorder %s16, 0
      %p91 = por %p89, %p90
      %p92 = scmp.ne.s32.totalorder %s80, %s81
      %p93 = scmp.eq.s32.totalorder %s17, 1
      %p94 = por %p92, %p93
      %p96 = scmp.ne.s32.totalorder %s81, %s95
      %p97 = scmp.eq.s32.totalorder %s17, 0
      %p98 = por %p96, %p97
      %s99 = ssub.s32 %s18, %s30
      %s100 = ssub.s32 %s19, %s26
      %s101 = sor.u32 %s99, %s100
      %p102 = scmp.eq.s32.totalorder %s101, 0
      %s104 = sadd.s32 %s103, 1
      %s105 = scalar_select %p102, %s103, %s104
      %p108 = pneg %p102
      %p109 = scmp.eq.s32.totalorder %s11, 1
      %p110 = por %p108, %p109
      %p111 = scmp.ne.s32.totalorder %s103, %s106
      %p112 = scmp.eq.s32.totalorder %s11, 0
      %p113 = por %p111, %p112
      %p114 = scmp.ne.s32.totalorder %s103, %s106
      %p115 = scmp.eq.s32.totalorder %s16, 1
      %p116 = por %p114, %p115
      %p117 = scmp.ne.s32.totalorder %s106, %s107
      %p118 = scmp.eq.s32.totalorder %s16, 0
      %p119 = por %p117, %p118
      %p120 = scmp.ne.s32.totalorder %s106, %s107
      %p121 = scmp.eq.s32.totalorder %s17, 1
      %p122 = por %p120, %p121
      %p124 = scmp.ne.s32.totalorder %s107, %s123
      %p125 = scmp.eq.s32.totalorder %s17, 0
      %p126 = por %p124, %p125
      %p127 = scmp.le.s32.totalorder 1, %s11
      %p128 = scmp.lt.s32.totalorder %s11, 3
      %p129 = pnand %p127, %p128
      %p130 = pneg %p129
      // Predicated region
      $region9: #{gabor_layer_forward.1} parent=5 // pred_check
        _
      $region10: #{gabor_layer_forward.1} parent=5 // pred_check_branch
        %132 = sbr.rel (%p129) target = $region12
      $region11: #{gabor_layer_forward.1} parent=5 // pred_region
        %s133 = ssub.s32 %s11, 1
        // Predicated region
        $region13: #{gabor_layer_forward.1} parent=11 // pred_check
          %p134 = pneg %p70
        $region14: #{gabor_layer_forward.1} parent=11 // pred_check_branch
          %136 = sbr.rel (%p134) target = $region16
        $region15: #{gabor_layer_forward.1} parent=11 // pred_region
          %s138 = ssub.s32 16, 16
          %139 = vsyncadd [#allocation3], %s138
          %s141 = sshll.u32 %s1, 4
          %s142 = int_to_ptr.vmem [resolvable:$true] %s141
          %144 = dma.vmem_to_smem %s142, 16, [#allocation2], [#allocation3]
        $region16: #{gabor_layer_forward.1} parent=11 // pred_fallthru
          _
        // Predicated region
        $region17: #{gabor_layer_forward.1} parent=11 // pred_check
          %p145 = pneg %p91
        $region18: #{gabor_layer_forward.1} parent=11 // pred_check_branch
          %147 = sbr.rel (%p145) target = $region20
        $region19: #{gabor_layer_forward.1} parent=11 // pred_region
          %s149 = ssub.s32 16, 16
          %150 = vsyncadd [#allocation5], %s149
          %s152 = sshll.u32 %s2, 4
          %s153 = int_to_ptr.vmem [resolvable:$true] %s152
          %155 = dma.vmem_to_smem %s153, 16, [#allocation4], [#allocation5]
        $region20: #{gabor_layer_forward.1} parent=11 // pred_fallthru
          _
      $region12: #{gabor_layer_forward.1} parent=5 // pred_fallthru
        _
      %p156 = scmp.lt.s32.totalorder %s11, 2
      // Predicated region
      $region21: #{gabor_layer_forward.1} parent=5 // pred_check
        %p157 = pneg %p156
      $region22: #{gabor_layer_forward.1} parent=5 // pred_check_branch
        %159 = sbr.rel (%p157) target = $region24
      $region23: #{gabor_layer_forward.1} parent=5 // pred_region
        // Predicated region
        $region25: #{gabor_layer_forward.1} parent=23 // pred_check
          %p160 = pneg %p43
        $region26: #{gabor_layer_forward.1} parent=23 // pred_check_branch
          %162 = sbr.rel (%p160) target = $region28
        $region27: #{gabor_layer_forward.1} parent=23 // pred_region
          %p163 = scmp.lt.s32.totalorder %s18, 1
          %s164 = scalar_select %p163, %s18, 1
          %s165 = smul.addr %s164, 2
          %s166 = smul.addr %s165, 8
          %s167 = scalar_lea.vmem %s0, %s166
        $region28: #{gabor_layer_forward.1} parent=23 // pred_fallthru
          _
      $region24: #{gabor_layer_forward.1} parent=5 // pred_fallthru
        _
      %p168 = scmp.le.s32.totalorder 1, %s11
      %p169 = scmp.lt.s32.totalorder %s11, 3
      %p170 = pnand %p168, %p169
      %p171 = pneg %p170
      // Predicated region
      $region29: #{gabor_layer_forward.1} parent=5 // pred_check
        _
      $region30: #{gabor_layer_forward.1} parent=5 // pred_check_branch
        %173 = sbr.rel (%p170) target = $region32
      $region31: #{gabor_layer_forward.1} parent=5 // pred_region
        %s174 = ssub.s32 %s11, 1
        // Predicated region
        $region33: #{gabor_layer_forward.1} parent=31 // pred_check
          %p175 = pneg %p70
        $region34: #{gabor_layer_forward.1} parent=31 // pred_check_branch
          %177 = sbr.rel (%p175) target = $region36
        $region35: #{gabor_layer_forward.1} parent=31 // pred_region
          %178 = dma.done [#allocation3], 16
        $region36: #{gabor_layer_forward.1} parent=31 // pred_fallthru
          _
        // Predicated region
        $region37: #{gabor_layer_forward.1} parent=31 // pred_check
          %p179 = pneg %p91
        $region38: #{gabor_layer_forward.1} parent=31 // pred_check_branch
          %181 = sbr.rel (%p179) target = $region40
        $region39: #{gabor_layer_forward.1} parent=31 // pred_region
          %182 = dma.done [#allocation5], 16
        $region40: #{gabor_layer_forward.1} parent=31 // pred_fallthru
          _
        %183 = sfence
        %p184 = scmp.lt.s32.totalorder %s20, 1
        %s185 = scalar_select %p184, %s20, 1
        %s186 = smul.addr %s185, 2
        %s187 = smul.addr %s186, 8
        %s188 = scalar_lea.vmem %s0, %s187
        %p189 = pneg %p49
        %p190 = pneg %p46
        %p191 = pneg %p70
        %p192 = pneg %p67
        %p193 = pneg %p91
        %p194 = pneg %p88
        %p195 = pneg %p119
        %p196 = pneg %p116
        %s197 = smul.u32 4, %s21
        %p198 = scmp.lt.s32.totalorder %s20, 1
        %s199 = scalar_select %p198, %s20, 1
        %p200 = scmp.lt.s32.totalorder %s197, 3
        %s201 = scalar_select %p200, %s197, 3
        %s202 = smul.addr %s201, 2
        %s203 = smul.addr %s199, 8
        %s204 = sadd.s32 %s202, %s203
        %s205 = smul.addr %s204, 8
        %s206 = scalar_lea.vmem %s3, %s205
        %p207 = scmp.lt.s32.totalorder %s20, 1
        %s208 = scalar_select %p207, %s20, 1
        %s209 = smul.addr %s208, 2
        %s210 = smul.addr %s209, 8
        %s211 = scalar_lea.vmem %s0, %s210
        %s212 = smul.u32 4, %s21
        %p213 = scmp.lt.s32.totalorder %s20, 1
        %s214 = scalar_select %p213, %s20, 1
        %p215 = scmp.lt.s32.totalorder %s212, 3
        %s216 = scalar_select %p215, %s212, 3
        %s217 = smul.addr %s216, 2
        %s218 = smul.addr %s214, 8
        %s219 = sadd.s32 %s217, %s218
        %s220 = smul.addr %s219, 8
        %s221 = scalar_lea.vmem %s3, %s220
        %s222 = smul.u32 4, %s21
        %s223 = smul.u32 %s21, 4
        %v224 = vld [vmem:[%s211] sm:$0xff]
        %v225 = vld [vmem:[%s211 + $0x8] sm:$0xf]
        %s226 = smul.u32 %s21, 100
        %s227 = sld [smem:[#allocation2 + %s226]]
        %v228 = vstv %s227
        %v229 = vmul.f32 %v224, %v228
        %v230 = vmul.f32 %v225, %v228
        %s231 = sld [smem:[#allocation4 + %s223]]
        %v232 = vstv %s231
        %v233 = vadd.f32 %v229, %v232
        %v234 = vadd.f32 %v230, %v232
        %s235 = sadd.s32 %s223, 1
        %s236 = smul.u32 %s235, 25
        %s237 = sld [smem:[#allocation2 + %s236]]
        %v238 = vstv %s237
        %v239 = vmul.f32 %v224, %v238
        %v240 = vmul.f32 %v225, %v238
        %s241 = sld [smem:[#allocation4 + %s235]]
        %v242 = vstv %s241
        %v243 = vadd.f32 %v239, %v242
        %v244 = vadd.f32 %v240, %v242
        %s245 = sadd.s32 %s223, 2
        %s246 = smul.u32 %s245, 25
        %s247 = sld [smem:[#allocation2 + %s246]]
        %v248 = vstv %s247
        %v249 = vmul.f32 %v224, %v248
        %v250 = vmul.f32 %v225, %v248
        %s251 = sld [smem:[#allocation4 + %s245]]
        %v252 = vstv %s251
        %v253 = vadd.f32 %v249, %v252
        %v254 = vadd.f32 %v250, %v252
        %s255 = sadd.s32 %s223, 3
        %s256 = smul.u32 %s255, 25
        %s257 = sld [smem:[#allocation2 + %s256]]
        %v258 = vstv %s257
        %v259 = vmul.f32 %v224, %v258
        %v260 = vmul.f32 %v225, %v258
        %s261 = sld [smem:[#allocation4 + %s255]]
        %v262 = vstv %s261
        %v263 = vadd.f32 %v259, %v262
        %v264 = vadd.f32 %v260, %v262
        %s265 = sadd.s32 %s226, 1
        %s266 = sld [smem:[#allocation2 + %s265]]
        %v267 = vstv %s266
        %v268 = vmul.f32 %v224, %v267
        %v269 = vmul.f32 %v225, %v267
        %272 = vrot.lane.b32.xlu0 %v268, 127
        %v273 = vpop.permute.xlu0 %272
        %274 = vrot.lane.b32.xlu0 %v269, 127
        %v275 = vpop.permute.xlu0 %274
        %v278 = vadd.f32 %v233, %v273
        %v279 = vadd.f32 %v234, %v275
        %s280 = sadd.s32 %s236, 1
        %s281 = sld [smem:[#allocation2 + %s280]]
        %v282 = vstv %s281
        %v283 = vmul.f32 %v224, %v282
        %v284 = vmul.f32 %v225, %v282
        %287 = vrot.lane.b32.xlu0 %v283, 127
        %v288 = vpop.permute.xlu0 %287
        %289 = vrot.lane.b32.xlu0 %v284, 127
        %v290 = vpop.permute.xlu0 %289
        %v293 = vadd.f32 %v243, %v288
        %v294 = vadd.f32 %v244, %v290
        %s295 = sadd.s32 %s246, 1
        %s296 = sld [smem:[#allocation2 + %s295]]
        %v297 = vstv %s296
        %v298 = vmul.f32 %v224, %v297
        %v299 = vmul.f32 %v225, %v297
        %302 = vrot.lane.b32.xlu0 %v298, 127
        %v303 = vpop.permute.xlu0 %302
        %304 = vrot.lane.b32.xlu0 %v299, 127
        %v305 = vpop.permute.xlu0 %304
        %v308 = vadd.f32 %v253, %v303
        %v309 = vadd.f32 %v254, %v305
        %s310 = sadd.s32 %s256, 1
        %s311 = sld [smem:[#allocation2 + %s310]]
        %v312 = vstv %s311
        %v313 = vmul.f32 %v224, %v312
        %v314 = vmul.f32 %v225, %v312
        %317 = vrot.lane.b32.xlu0 %v313, 127
        %v318 = vpop.permute.xlu0 %317
        %319 = vrot.lane.b32.xlu0 %v314, 127
        %v320 = vpop.permute.xlu0 %319
        %v323 = vadd.f32 %v263, %v318
        %v324 = vadd.f32 %v264, %v320
        %s325 = sadd.s32 %s226, 2
        %s326 = sld [smem:[#allocation2 + %s325]]
        %v327 = vstv %s326
        %v328 = vmul.f32 %v224, %v327
        %v329 = vmul.f32 %v225, %v327
        %332 = vrot.lane.b32.xlu0 %v328, 126
        %v333 = vpop.permute.xlu0 %332
        %334 = vrot.lane.b32.xlu0 %v329, 126
        %v335 = vpop.permute.xlu0 %334
        %v338 = vadd.f32 %v278, %v333
        %v339 = vadd.f32 %v279, %v335
        %s340 = sadd.s32 %s236, 2
        %s341 = sld [smem:[#allocation2 + %s340]]
        %v342 = vstv %s341
        %v343 = vmul.f32 %v224, %v342
        %v344 = vmul.f32 %v225, %v342
        %347 = vrot.lane.b32.xlu0 %v343, 126
        %v348 = vpop.permute.xlu0 %347
        %349 = vrot.lane.b32.xlu0 %v344, 126
        %v350 = vpop.permute.xlu0 %349
        %v353 = vadd.f32 %v293, %v348
        %v354 = vadd.f32 %v294, %v350
        %s355 = sadd.s32 %s246, 2
        %s356 = sld [smem:[#allocation2 + %s355]]
        %v357 = vstv %s356
        %v358 = vmul.f32 %v224, %v357
        %v359 = vmul.f32 %v225, %v357
        %362 = vrot.lane.b32.xlu0 %v358, 126
        %v363 = vpop.permute.xlu0 %362
        %364 = vrot.lane.b32.xlu0 %v359, 126
        %v365 = vpop.permute.xlu0 %364
        %v368 = vadd.f32 %v308, %v363
        %v369 = vadd.f32 %v309, %v365
        %s370 = sadd.s32 %s256, 2
        %s371 = sld [smem:[#allocation2 + %s370]]
        %v372 = vstv %s371
        %v373 = vmul.f32 %v224, %v372
        %v374 = vmul.f32 %v225, %v372
        %377 = vrot.lane.b32.xlu0 %v373, 126
        %v378 = vpop.permute.xlu0 %377
        %379 = vrot.lane.b32.xlu0 %v374, 126
        %v380 = vpop.permute.xlu0 %379
        %v383 = vadd.f32 %v323, %v378
        %v384 = vadd.f32 %v324, %v380
        %s385 = sadd.s32 %s226, 3
        %s386 = sld [smem:[#allocation2 + %s385]]
        %v387 = vstv %s386
        %v388 = vmul.f32 %v224, %v387
        %v389 = vmul.f32 %v225, %v387
        %392 = vrot.lane.b32.xlu0 %v388, 125
        %v393 = vpop.permute.xlu0 %392
        %394 = vrot.lane.b32.xlu0 %v389, 125
        %v395 = vpop.permute.xlu0 %394
        %v398 = vadd.f32 %v338, %v393
        %v399 = vadd.f32 %v339, %v395
        %s400 = sadd.s32 %s236, 3
        %s401 = sld [smem:[#allocation2 + %s400]]
        %v402 = vstv %s401
        %v403 = vmul.f32 %v224, %v402
        %v404 = vmul.f32 %v225, %v402
        %407 = vrot.lane.b32.xlu0 %v403, 125
        %v408 = vpop.permute.xlu0 %407
        %409 = vrot.lane.b32.xlu0 %v404, 125
        %v410 = vpop.permute.xlu0 %409
        %v413 = vadd.f32 %v353, %v408
        %v414 = vadd.f32 %v354, %v410
        %s415 = sadd.s32 %s246, 3
        %s416 = sld [smem:[#allocation2 + %s415]]
        %v417 = vstv %s416
        %v418 = vmul.f32 %v224, %v417
        %v419 = vmul.f32 %v225, %v417
        %422 = vrot.lane.b32.xlu0 %v418, 125
        %v423 = vpop.permute.xlu0 %422
        %424 = vrot.lane.b32.xlu0 %v419, 125
        %v425 = vpop.permute.xlu0 %424
        %v428 = vadd.f32 %v368, %v423
        %v429 = vadd.f32 %v369, %v425
        %s430 = sadd.s32 %s256, 3
        %s431 = sld [smem:[#allocation2 + %s430]]
        %v432 = vstv %s431
        %v433 = vmul.f32 %v224, %v432
        %v434 = vmul.f32 %v225, %v432
        %437 = vrot.lane.b32.xlu0 %v433, 125
        %v438 = vpop.permute.xlu0 %437
        %439 = vrot.lane.b32.xlu0 %v434, 125
        %v440 = vpop.permute.xlu0 %439
        %v443 = vadd.f32 %v383, %v438
        %v444 = vadd.f32 %v384, %v440
        %s445 = sadd.s32 %s226, 4
        %s446 = sld [smem:[#allocation2 + %s445]]
        %v447 = vstv %s446
        %v448 = vmul.f32 %v224, %v447
        %v449 = vmul.f32 %v225, %v447
        %452 = vrot.lane.b32.xlu0 %v448, 124
        %v453 = vpop.permute.xlu0 %452
        %454 = vrot.lane.b32.xlu0 %v449, 124
        %v455 = vpop.permute.xlu0 %454
        %v458 = vadd.f32 %v398, %v453
        %v459 = vadd.f32 %v399, %v455
        %s460 = sadd.s32 %s236, 4
        %s461 = sld [smem:[#allocation2 + %s460]]
        %v462 = vstv %s461
        %v463 = vmul.f32 %v224, %v462
        %v464 = vmul.f32 %v225, %v462
        %467 = vrot.lane.b32.xlu0 %v463, 124
        %v468 = vpop.permute.xlu0 %467
        %469 = vrot.lane.b32.xlu0 %v464, 124
        %v470 = vpop.permute.xlu0 %469
        %v473 = vadd.f32 %v413, %v468
        %v474 = vadd.f32 %v414, %v470
        %s475 = sadd.s32 %s246, 4
        %s476 = sld [smem:[#allocation2 + %s475]]
        %v477 = vstv %s476
        %v478 = vmul.f32 %v224, %v477
        %v479 = vmul.f32 %v225, %v477
        %482 = vrot.lane.b32.xlu0 %v478, 124
        %v483 = vpop.permute.xlu0 %482
        %484 = vrot.lane.b32.xlu0 %v479, 124
        %v485 = vpop.permute.xlu0 %484
        %v488 = vadd.f32 %v428, %v483
        %v489 = vadd.f32 %v429, %v485
        %s490 = sadd.s32 %s256, 4
        %s491 = sld [smem:[#allocation2 + %s490]]
        %v492 = vstv %s491
        %v493 = vmul.f32 %v224, %v492
        %v494 = vmul.f32 %v225, %v492
        %497 = vrot.lane.b32.xlu0 %v493, 124
        %v498 = vpop.permute.xlu0 %497
        %499 = vrot.lane.b32.xlu0 %v494, 124
        %v500 = vpop.permute.xlu0 %499
        %v503 = vadd.f32 %v443, %v498
        %v504 = vadd.f32 %v444, %v500
        %v505 = vld [vmem:[%s211 + $0x1] sm:$0xff]
        %v506 = vld [vmem:[%s211 + $0x9] sm:$0xf]
        %s507 = sadd.s32 %s226, 5
        %s508 = sld [smem:[#allocation2 + %s507]]
        %v509 = vstv %s508
        %v510 = vmul.f32 %v505, %v509
        %v511 = vmul.f32 %v506, %v509
        %v512 = vadd.f32 %v458, %v510
        %v513 = vadd.f32 %v459, %v511
        %s514 = sadd.s32 %s236, 5
        %s515 = sld [smem:[#allocation2 + %s514]]
        %v516 = vstv %s515
        %v517 = vmul.f32 %v505, %v516
        %v518 = vmul.f32 %v506, %v516
        %v519 = vadd.f32 %v473, %v517
        %v520 = vadd.f32 %v474, %v518
        %s521 = sadd.s32 %s246, 5
        %s522 = sld [smem:[#allocation2 + %s521]]
        %v523 = vstv %s522
        %v524 = vmul.f32 %v505, %v523
        %v525 = vmul.f32 %v506, %v523
        %v526 = vadd.f32 %v488, %v524
        %v527 = vadd.f32 %v489, %v525
        %s528 = sadd.s32 %s256, 5
        %s529 = sld [smem:[#allocation2 + %s528]]
        %v530 = vstv %s529
        %v531 = vmul.f32 %v505, %v530
        %v532 = vmul.f32 %v506, %v530
        %v533 = vadd.f32 %v503, %v531
        %v534 = vadd.f32 %v504, %v532
        %s535 = sadd.s32 %s226, 6
        %s536 = sld [smem:[#allocation2 + %s535]]
        %v537 = vstv %s536
        %v538 = vmul.f32 %v505, %v537
        %v539 = vmul.f32 %v506, %v537
        %542 = vrot.lane.b32.xlu0 %v538, 127
        %v543 = vpop.permute.xlu0 %542
        %544 = vrot.lane.b32.xlu0 %v539, 127
        %v545 = vpop.permute.xlu0 %544
        %v548 = vadd.f32 %v512, %v543
        %v549 = vadd.f32 %v513, %v545
        %s550 = sadd.s32 %s236, 6
        %s551 = sld [smem:[#allocation2 + %s550]]
        %v552 = vstv %s551
        %v553 = vmul.f32 %v505, %v552
        %v554 = vmul.f32 %v506, %v552
        %557 = vrot.lane.b32.xlu0 %v553, 127
        %v558 = vpop.permute.xlu0 %557
        %559 = vrot.lane.b32.xlu0 %v554, 127
        %v560 = vpop.permute.xlu0 %559
        %v563 = vadd.f32 %v519, %v558
        %v564 = vadd.f32 %v520, %v560
        %s565 = sadd.s32 %s246, 6
        %s566 = sld [smem:[#allocation2 + %s565]]
        %v567 = vstv %s566
        %v568 = vmul.f32 %v505, %v567
        %v569 = vmul.f32 %v506, %v567
        %572 = vrot.lane.b32.xlu0 %v568, 127
        %v573 = vpop.permute.xlu0 %572
        %574 = vrot.lane.b32.xlu0 %v569, 127
        %v575 = vpop.permute.xlu0 %574
        %v578 = vadd.f32 %v526, %v573
        %v579 = vadd.f32 %v527, %v575
        %s580 = sadd.s32 %s256, 6
        %s581 = sld [smem:[#allocation2 + %s580]]
        %v582 = vstv %s581
        %v583 = vmul.f32 %v505, %v582
        %v584 = vmul.f32 %v506, %v582
        %587 = vrot.lane.b32.xlu0 %v583, 127
        %v588 = vpop.permute.xlu0 %587
        %589 = vrot.lane.b32.xlu0 %v584, 127
        %v590 = vpop.permute.xlu0 %589
        %v593 = vadd.f32 %v533, %v588
        %v594 = vadd.f32 %v534, %v590
        %s595 = sadd.s32 %s226, 7
        %s596 = sld [smem:[#allocation2 + %s595]]
        %v597 = vstv %s596
        %v598 = vmul.f32 %v505, %v597
        %v599 = vmul.f32 %v506, %v597
        %602 = vrot.lane.b32.xlu0 %v598, 126
        %v603 = vpop.permute.xlu0 %602
        %604 = vrot.lane.b32.xlu0 %v599, 126
        %v605 = vpop.permute.xlu0 %604
        %v608 = vadd.f32 %v548, %v603
        %v609 = vadd.f32 %v549, %v605
        %s610 = sadd.s32 %s236, 7
        %s611 = sld [smem:[#allocation2 + %s610]]
        %v612 = vstv %s611
        %v613 = vmul.f32 %v505, %v612
        %v614 = vmul.f32 %v506, %v612
        %617 = vrot.lane.b32.xlu0 %v613, 126
        %v618 = vpop.permute.xlu0 %617
        %619 = vrot.lane.b32.xlu0 %v614, 126
        %v620 = vpop.permute.xlu0 %619
        %v623 = vadd.f32 %v563, %v618
        %v624 = vadd.f32 %v564, %v620
        %s625 = sadd.s32 %s246, 7
        %s626 = sld [smem:[#allocation2 + %s625]]
        %v627 = vstv %s626
        %v628 = vmul.f32 %v505, %v627
        %v629 = vmul.f32 %v506, %v627
        %632 = vrot.lane.b32.xlu0 %v628, 126
        %v633 = vpop.permute.xlu0 %632
        %634 = vrot.lane.b32.xlu0 %v629, 126
        %v635 = vpop.permute.xlu0 %634
        %v638 = vadd.f32 %v578, %v633
        %v639 = vadd.f32 %v579, %v635
        %s640 = sadd.s32 %s256, 7
        %s641 = sld [smem:[#allocation2 + %s640]]
        %v642 = vstv %s641
        %v643 = vmul.f32 %v505, %v642
        %v644 = vmul.f32 %v506, %v642
        %647 = vrot.lane.b32.xlu0 %v643, 126
        %v648 = vpop.permute.xlu0 %647
        %649 = vrot.lane.b32.xlu0 %v644, 126
        %v650 = vpop.permute.xlu0 %649
        %v653 = vadd.f32 %v593, %v648
        %v654 = vadd.f32 %v594, %v650
        %s655 = sadd.s32 %s226, 8
        %s656 = sld [smem:[#allocation2 + %s655]]
        %v657 = vstv %s656
        %v658 = vmul.f32 %v505, %v657
        %v659 = vmul.f32 %v506, %v657
        %662 = vrot.lane.b32.xlu0 %v658, 125
        %v663 = vpop.permute.xlu0 %662
        %664 = vrot.lane.b32.xlu0 %v659, 125
        %v665 = vpop.permute.xlu0 %664
        %v668 = vadd.f32 %v608, %v663
        %v669 = vadd.f32 %v609, %v665
        %s670 = sadd.s32 %s236, 8
        %s671 = sld [smem:[#allocation2 + %s670]]
        %v672 = vstv %s671
        %v673 = vmul.f32 %v505, %v672
        %v674 = vmul.f32 %v506, %v672
        %677 = vrot.lane.b32.xlu0 %v673, 125
        %v678 = vpop.permute.xlu0 %677
        %679 = vrot.lane.b32.xlu0 %v674, 125
        %v680 = vpop.permute.xlu0 %679
        %v683 = vadd.f32 %v623, %v678
        %v684 = vadd.f32 %v624, %v680
        %s685 = sadd.s32 %s246, 8
        %s686 = sld [smem:[#allocation2 + %s685]]
        %v687 = vstv %s686
        %v688 = vmul.f32 %v505, %v687
        %v689 = vmul.f32 %v506, %v687
        %692 = vrot.lane.b32.xlu0 %v688, 125
        %v693 = vpop.permute.xlu0 %692
        %694 = vrot.lane.b32.xlu0 %v689, 125
        %v695 = vpop.permute.xlu0 %694
        %v698 = vadd.f32 %v638, %v693
        %v699 = vadd.f32 %v639, %v695
        %s700 = sadd.s32 %s256, 8
        %s701 = sld [smem:[#allocation2 + %s700]]
        %v702 = vstv %s701
        %v703 = vmul.f32 %v505, %v702
        %v704 = vmul.f32 %v506, %v702
        %707 = vrot.lane.b32.xlu0 %v703, 125
        %v708 = vpop.permute.xlu0 %707
        %709 = vrot.lane.b32.xlu0 %v704, 125
        %v710 = vpop.permute.xlu0 %709
        %v713 = vadd.f32 %v653, %v708
        %v714 = vadd.f32 %v654, %v710
        %s715 = sadd.s32 %s226, 9
        %s716 = sld [smem:[#allocation2 + %s715]]
        %v717 = vstv %s716
        %v718 = vmul.f32 %v505, %v717
        %v719 = vmul.f32 %v506, %v717
        %722 = vrot.lane.b32.xlu0 %v718, 124
        %v723 = vpop.permute.xlu0 %722
        %724 = vrot.lane.b32.xlu0 %v719, 124
        %v725 = vpop.permute.xlu0 %724
        %v728 = vadd.f32 %v668, %v723
        %v729 = vadd.f32 %v669, %v725
        %s730 = sadd.s32 %s236, 9
        %s731 = sld [smem:[#allocation2 + %s730]]
        %v732 = vstv %s731
        %v733 = vmul.f32 %v505, %v732
        %v734 = vmul.f32 %v506, %v732
        %737 = vrot.lane.b32.xlu0 %v733, 124
        %v738 = vpop.permute.xlu0 %737
        %739 = vrot.lane.b32.xlu0 %v734, 124
        %v740 = vpop.permute.xlu0 %739
        %v743 = vadd.f32 %v683, %v738
        %v744 = vadd.f32 %v684, %v740
        %s745 = sadd.s32 %s246, 9
        %s746 = sld [smem:[#allocation2 + %s745]]
        %v747 = vstv %s746
        %v748 = vmul.f32 %v505, %v747
        %v749 = vmul.f32 %v506, %v747
        %752 = vrot.lane.b32.xlu0 %v748, 124
        %v753 = vpop.permute.xlu0 %752
        %754 = vrot.lane.b32.xlu0 %v749, 124
        %v755 = vpop.permute.xlu0 %754
        %v758 = vadd.f32 %v698, %v753
        %v759 = vadd.f32 %v699, %v755
        %s760 = sadd.s32 %s256, 9
        %s761 = sld [smem:[#allocation2 + %s760]]
        %v762 = vstv %s761
        %v763 = vmul.f32 %v505, %v762
        %v764 = vmul.f32 %v506, %v762
        %767 = vrot.lane.b32.xlu0 %v763, 124
        %v768 = vpop.permute.xlu0 %767
        %769 = vrot.lane.b32.xlu0 %v764, 124
        %v770 = vpop.permute.xlu0 %769
        %v773 = vadd.f32 %v713, %v768
        %v774 = vadd.f32 %v714, %v770
        %v775 = vld [vmem:[%s211 + $0x2] sm:$0xff]
        %v776 = vld [vmem:[%s211 + $0xa] sm:$0xf]
        %s777 = sadd.s32 %s226, 10
        %s778 = sld [smem:[#allocation2 + %s777]]
        %v779 = vstv %s778
        %v780 = vmul.f32 %v775, %v779
        %v781 = vmul.f32 %v776, %v779
        %v782 = vadd.f32 %v728, %v780
        %v783 = vadd.f32 %v729, %v781
        %s784 = sadd.s32 %s236, 10
        %s785 = sld [smem:[#allocation2 + %s784]]
        %v786 = vstv %s785
        %v787 = vmul.f32 %v775, %v786
        %v788 = vmul.f32 %v776, %v786
        %v789 = vadd.f32 %v743, %v787
        %v790 = vadd.f32 %v744, %v788
        %s791 = sadd.s32 %s246, 10
        %s792 = sld [smem:[#allocation2 + %s791]]
        %v793 = vstv %s792
        %v794 = vmul.f32 %v775, %v793
        %v795 = vmul.f32 %v776, %v793
        %v796 = vadd.f32 %v758, %v794
        %v797 = vadd.f32 %v759, %v795
        %s798 = sadd.s32 %s256, 10
        %s799 = sld [smem:[#allocation2 + %s798]]
        %v800 = vstv %s799
        %v801 = vmul.f32 %v775, %v800
        %v802 = vmul.f32 %v776, %v800
        %v803 = vadd.f32 %v773, %v801
        %v804 = vadd.f32 %v774, %v802
        %s805 = sadd.s32 %s226, 11
        %s806 = sld [smem:[#allocation2 + %s805]]
        %v807 = vstv %s806
        %v808 = vmul.f32 %v775, %v807
        %v809 = vmul.f32 %v776, %v807
        %812 = vrot.lane.b32.xlu0 %v808, 127
        %v813 = vpop.permute.xlu0 %812
        %814 = vrot.lane.b32.xlu0 %v809, 127
        %v815 = vpop.permute.xlu0 %814
        %v818 = vadd.f32 %v782, %v813
        %v819 = vadd.f32 %v783, %v815
        %s820 = sadd.s32 %s236, 11
        %s821 = sld [smem:[#allocation2 + %s820]]
        %v822 = vstv %s821
        %v823 = vmul.f32 %v775, %v822
        %v824 = vmul.f32 %v776, %v822
        %827 = vrot.lane.b32.xlu0 %v823, 127
        %v828 = vpop.permute.xlu0 %827
        %829 = vrot.lane.b32.xlu0 %v824, 127
        %v830 = vpop.permute.xlu0 %829
        %v833 = vadd.f32 %v789, %v828
        %v834 = vadd.f32 %v790, %v830
        %s835 = sadd.s32 %s246, 11
        %s836 = sld [smem:[#allocation2 + %s835]]
        %v837 = vstv %s836
        %v838 = vmul.f32 %v775, %v837
        %v839 = vmul.f32 %v776, %v837
        %842 = vrot.lane.b32.xlu0 %v838, 127
        %v843 = vpop.permute.xlu0 %842
        %844 = vrot.lane.b32.xlu0 %v839, 127
        %v845 = vpop.permute.xlu0 %844
        %v848 = vadd.f32 %v796, %v843
        %v849 = vadd.f32 %v797, %v845
        %s850 = sadd.s32 %s256, 11
        %s851 = sld [smem:[#allocation2 + %s850]]
        %v852 = vstv %s851
        %v853 = vmul.f32 %v775, %v852
        %v854 = vmul.f32 %v776, %v852
        %857 = vrot.lane.b32.xlu0 %v853, 127
        %v858 = vpop.permute.xlu0 %857
        %859 = vrot.lane.b32.xlu0 %v854, 127
        %v860 = vpop.permute.xlu0 %859
        %v863 = vadd.f32 %v803, %v858
        %v864 = vadd.f32 %v804, %v860
        %s865 = sadd.s32 %s226, 12
        %s866 = sld [smem:[#allocation2 + %s865]]
        %v867 = vstv %s866
        %v868 = vmul.f32 %v775, %v867
        %v869 = vmul.f32 %v776, %v867
        %872 = vrot.lane.b32.xlu0 %v868, 126
        %v873 = vpop.permute.xlu0 %872
        %874 = vrot.lane.b32.xlu0 %v869, 126
        %v875 = vpop.permute.xlu0 %874
        %v878 = vadd.f32 %v818, %v873
        %v879 = vadd.f32 %v819, %v875
        %s880 = sadd.s32 %s236, 12
        %s881 = sld [smem:[#allocation2 + %s880]]
        %v882 = vstv %s881
        %v883 = vmul.f32 %v775, %v882
        %v884 = vmul.f32 %v776, %v882
        %887 = vrot.lane.b32.xlu0 %v883, 126
        %v888 = vpop.permute.xlu0 %887
        %889 = vrot.lane.b32.xlu0 %v884, 126
        %v890 = vpop.permute.xlu0 %889
        %v893 = vadd.f32 %v833, %v888
        %v894 = vadd.f32 %v834, %v890
        %s895 = sadd.s32 %s246, 12
        %s896 = sld [smem:[#allocation2 + %s895]]
        %v897 = vstv %s896
        %v898 = vmul.f32 %v775, %v897
        %v899 = vmul.f32 %v776, %v897
        %902 = vrot.lane.b32.xlu0 %v898, 126
        %v903 = vpop.permute.xlu0 %902
        %904 = vrot.lane.b32.xlu0 %v899, 126
        %v905 = vpop.permute.xlu0 %904
        %v908 = vadd.f32 %v848, %v903
        %v909 = vadd.f32 %v849, %v905
        %s910 = sadd.s32 %s256, 12
        %s911 = sld [smem:[#allocation2 + %s910]]
        %v912 = vstv %s911
        %v913 = vmul.f32 %v775, %v912
        %v914 = vmul.f32 %v776, %v912
        %917 = vrot.lane.b32.xlu0 %v913, 126
        %v918 = vpop.permute.xlu0 %917
        %919 = vrot.lane.b32.xlu0 %v914, 126
        %v920 = vpop.permute.xlu0 %919
        %v923 = vadd.f32 %v863, %v918
        %v924 = vadd.f32 %v864, %v920
        %s925 = sadd.s32 %s226, 13
        %s926 = sld [smem:[#allocation2 + %s925]]
        %v927 = vstv %s926
        %v928 = vmul.f32 %v775, %v927
        %v929 = vmul.f32 %v776, %v927
        %932 = vrot.lane.b32.xlu0 %v928, 125
        %v933 = vpop.permute.xlu0 %932
        %934 = vrot.lane.b32.xlu0 %v929, 125
        %v935 = vpop.permute.xlu0 %934
        %v938 = vadd.f32 %v878, %v933
        %v939 = vadd.f32 %v879, %v935
        %s940 = sadd.s32 %s236, 13
        %s941 = sld [smem:[#allocation2 + %s940]]
        %v942 = vstv %s941
        %v943 = vmul.f32 %v775, %v942
        %v944 = vmul.f32 %v776, %v942
        %947 = vrot.lane.b32.xlu0 %v943, 125
        %v948 = vpop.permute.xlu0 %947
        %949 = vrot.lane.b32.xlu0 %v944, 125
        %v950 = vpop.permute.xlu0 %949
        %v953 = vadd.f32 %v893, %v948
        %v954 = vadd.f32 %v894, %v950
        %s955 = sadd.s32 %s246, 13
        %s956 = sld [smem:[#allocation2 + %s955]]
        %v957 = vstv %s956
        %v958 = vmul.f32 %v775, %v957
        %v959 = vmul.f32 %v776, %v957
        %962 = vrot.lane.b32.xlu0 %v958, 125
        %v963 = vpop.permute.xlu0 %962
        %964 = vrot.lane.b32.xlu0 %v959, 125
        %v965 = vpop.permute.xlu0 %964
        %v968 = vadd.f32 %v908, %v963
        %v969 = vadd.f32 %v909, %v965
        %s970 = sadd.s32 %s256, 13
        %s971 = sld [smem:[#allocation2 + %s970]]
        %v972 = vstv %s971
        %v973 = vmul.f32 %v775, %v972
        %v974 = vmul.f32 %v776, %v972
        %977 = vrot.lane.b32.xlu0 %v973, 125
        %v978 = vpop.permute.xlu0 %977
        %979 = vrot.lane.b32.xlu0 %v974, 125
        %v980 = vpop.permute.xlu0 %979
        %v983 = vadd.f32 %v923, %v978
        %v984 = vadd.f32 %v924, %v980
        %s985 = sadd.s32 %s226, 14
        %s986 = sld [smem:[#allocation2 + %s985]]
        %v987 = vstv %s986
        %v988 = vmul.f32 %v775, %v987
        %v989 = vmul.f32 %v776, %v987
        %992 = vrot.lane.b32.xlu0 %v988, 124
        %v993 = vpop.permute.xlu0 %992
        %994 = vrot.lane.b32.xlu0 %v989, 124
        %v995 = vpop.permute.xlu0 %994
        %v998 = vadd.f32 %v938, %v993
        %v999 = vadd.f32 %v939, %v995
        %s1000 = sadd.s32 %s236, 14
        %s1001 = sld [smem:[#allocation2 + %s1000]]
        %v1002 = vstv %s1001
        %v1003 = vmul.f32 %v775, %v1002
        %v1004 = vmul.f32 %v776, %v1002
        %1007 = vrot.lane.b32.xlu0 %v1003, 124
        %v1008 = vpop.permute.xlu0 %1007
        %1009 = vrot.lane.b32.xlu0 %v1004, 124
        %v1010 = vpop.permute.xlu0 %1009
        %v1013 = vadd.f32 %v953, %v1008
        %v1014 = vadd.f32 %v954, %v1010
        %s1015 = sadd.s32 %s246, 14
        %s1016 = sld [smem:[#allocation2 + %s1015]]
        %v1017 = vstv %s1016
        %v1018 = vmul.f32 %v775, %v1017
        %v1019 = vmul.f32 %v776, %v1017
        %1022 = vrot.lane.b32.xlu0 %v1018, 124
        %v1023 = vpop.permute.xlu0 %1022
        %1024 = vrot.lane.b32.xlu0 %v1019, 124
        %v1025 = vpop.permute.xlu0 %1024
        %v1028 = vadd.f32 %v968, %v1023
        %v1029 = vadd.f32 %v969, %v1025
        %s1030 = sadd.s32 %s256, 14
        %s1031 = sld [smem:[#allocation2 + %s1030]]
        %v1032 = vstv %s1031
        %v1033 = vmul.f32 %v775, %v1032
        %v1034 = vmul.f32 %v776, %v1032
        %1037 = vrot.lane.b32.xlu0 %v1033, 124
        %v1038 = vpop.permute.xlu0 %1037
        %1039 = vrot.lane.b32.xlu0 %v1034, 124
        %v1040 = vpop.permute.xlu0 %1039
        %v1043 = vadd.f32 %v983, %v1038
        %v1044 = vadd.f32 %v984, %v1040
        %v1045 = vld [vmem:[%s211 + $0x3] sm:$0xff]
        %v1046 = vld [vmem:[%s211 + $0xb] sm:$0xf]
        %s1047 = sadd.s32 %s226, 15
        %s1048 = sld [smem:[#allocation2 + %s1047]]
        %v1049 = vstv %s1048
        %v1050 = vmul.f32 %v1045, %v1049
        %v1051 = vmul.f32 %v1046, %v1049
        %v1052 = vadd.f32 %v998, %v1050
        %v1053 = vadd.f32 %v999, %v1051
        %s1054 = sadd.s32 %s236, 15
        %s1055 = sld [smem:[#allocation2 + %s1054]]
        %v1056 = vstv %s1055
        %v1057 = vmul.f32 %v1045, %v1056
        %v1058 = vmul.f32 %v1046, %v1056
        %v1059 = vadd.f32 %v1013, %v1057
        %v1060 = vadd.f32 %v1014, %v1058
        %s1061 = sadd.s32 %s246, 15
        %s1062 = sld [smem:[#allocation2 + %s1061]]
        %v1063 = vstv %s1062
        %v1064 = vmul.f32 %v1045, %v1063
        %v1065 = vmul.f32 %v1046, %v1063
        %v1066 = vadd.f32 %v1028, %v1064
        %v1067 = vadd.f32 %v1029, %v1065
        %s1068 = sadd.s32 %s256, 15
        %s1069 = sld [smem:[#allocation2 + %s1068]]
        %v1070 = vstv %s1069
        %v1071 = vmul.f32 %v1045, %v1070
        %v1072 = vmul.f32 %v1046, %v1070
        %v1073 = vadd.f32 %v1043, %v1071
        %v1074 = vadd.f32 %v1044, %v1072
        %s1075 = sadd.s32 %s226, 16
        %s1076 = sld [smem:[#allocation2 + %s1075]]
        %v1077 = vstv %s1076
        %v1078 = vmul.f32 %v1045, %v1077
        %v1079 = vmul.f32 %v1046, %v1077
        %1082 = vrot.lane.b32.xlu0 %v1078, 127
        %v1083 = vpop.permute.xlu0 %1082
        %1084 = vrot.lane.b32.xlu0 %v1079, 127
        %v1085 = vpop.permute.xlu0 %1084
        %v1088 = vadd.f32 %v1052, %v1083
        %v1089 = vadd.f32 %v1053, %v1085
        %s1090 = sadd.s32 %s236, 16
        %s1091 = sld [smem:[#allocation2 + %s1090]]
        %v1092 = vstv %s1091
        %v1093 = vmul.f32 %v1045, %v1092
        %v1094 = vmul.f32 %v1046, %v1092
        %1097 = vrot.lane.b32.xlu0 %v1093, 127
        %v1098 = vpop.permute.xlu0 %1097
        %1099 = vrot.lane.b32.xlu0 %v1094, 127
        %v1100 = vpop.permute.xlu0 %1099
        %v1103 = vadd.f32 %v1059, %v1098
        %v1104 = vadd.f32 %v1060, %v1100
        %s1105 = sadd.s32 %s246, 16
        %s1106 = sld [smem:[#allocation2 + %s1105]]
        %v1107 = vstv %s1106
        %v1108 = vmul.f32 %v1045, %v1107
        %v1109 = vmul.f32 %v1046, %v1107
        %1112 = vrot.lane.b32.xlu0 %v1108, 127
        %v1113 = vpop.permute.xlu0 %1112
        %1114 = vrot.lane.b32.xlu0 %v1109, 127
        %v1115 = vpop.permute.xlu0 %1114
        %v1118 = vadd.f32 %v1066, %v1113
        %v1119 = vadd.f32 %v1067, %v1115
        %s1120 = sadd.s32 %s256, 16
        %s1121 = sld [smem:[#allocation2 + %s1120]]
        %v1122 = vstv %s1121
        %v1123 = vmul.f32 %v1045, %v1122
        %v1124 = vmul.f32 %v1046, %v1122
        %1127 = vrot.lane.b32.xlu0 %v1123, 127
        %v1128 = vpop.permute.xlu0 %1127
        %1129 = vrot.lane.b32.xlu0 %v1124, 127
        %v1130 = vpop.permute.xlu0 %1129
        %v1133 = vadd.f32 %v1073, %v1128
        %v1134 = vadd.f32 %v1074, %v1130
        %s1135 = sadd.s32 %s226, 17
        %s1136 = sld [smem:[#allocation2 + %s1135]]
        %v1137 = vstv %s1136
        %v1138 = vmul.f32 %v1045, %v1137
        %v1139 = vmul.f32 %v1046, %v1137
        %1142 = vrot.lane.b32.xlu0 %v1138, 126
        %v1143 = vpop.permute.xlu0 %1142
        %1144 = vrot.lane.b32.xlu0 %v1139, 126
        %v1145 = vpop.permute.xlu0 %1144
        %v1148 = vadd.f32 %v1088, %v1143
        %v1149 = vadd.f32 %v1089, %v1145
        %s1150 = sadd.s32 %s236, 17
        %s1151 = sld [smem:[#allocation2 + %s1150]]
        %v1152 = vstv %s1151
        %v1153 = vmul.f32 %v1045, %v1152
        %v1154 = vmul.f32 %v1046, %v1152
        %1157 = vrot.lane.b32.xlu0 %v1153, 126
        %v1158 = vpop.permute.xlu0 %1157
        %1159 = vrot.lane.b32.xlu0 %v1154, 126
        %v1160 = vpop.permute.xlu0 %1159
        %v1163 = vadd.f32 %v1103, %v1158
        %v1164 = vadd.f32 %v1104, %v1160
        %s1165 = sadd.s32 %s246, 17
        %s1166 = sld [smem:[#allocation2 + %s1165]]
        %v1167 = vstv %s1166
        %v1168 = vmul.f32 %v1045, %v1167
        %v1169 = vmul.f32 %v1046, %v1167
        %1172 = vrot.lane.b32.xlu0 %v1168, 126
        %v1173 = vpop.permute.xlu0 %1172
        %1174 = vrot.lane.b32.xlu0 %v1169, 126
        %v1175 = vpop.permute.xlu0 %1174
        %v1178 = vadd.f32 %v1118, %v1173
        %v1179 = vadd.f32 %v1119, %v1175
        %s1180 = sadd.s32 %s256, 17
        %s1181 = sld [smem:[#allocation2 + %s1180]]
        %v1182 = vstv %s1181
        %v1183 = vmul.f32 %v1045, %v1182
        %v1184 = vmul.f32 %v1046, %v1182
        %1187 = vrot.lane.b32.xlu0 %v1183, 126
        %v1188 = vpop.permute.xlu0 %1187
        %1189 = vrot.lane.b32.xlu0 %v1184, 126
        %v1190 = vpop.permute.xlu0 %1189
        %v1193 = vadd.f32 %v1133, %v1188
        %v1194 = vadd.f32 %v1134, %v1190
        %s1195 = sadd.s32 %s226, 18
        %s1196 = sld [smem:[#allocation2 + %s1195]]
        %v1197 = vstv %s1196
        %v1198 = vmul.f32 %v1045, %v1197
        %v1199 = vmul.f32 %v1046, %v1197
        %1202 = vrot.lane.b32.xlu0 %v1198, 125
        %v1203 = vpop.permute.xlu0 %1202
        %1204 = vrot.lane.b32.xlu0 %v1199, 125
        %v1205 = vpop.permute.xlu0 %1204
        %v1208 = vadd.f32 %v1148, %v1203
        %v1209 = vadd.f32 %v1149, %v1205
        %s1210 = sadd.s32 %s236, 18
        %s1211 = sld [smem:[#allocation2 + %s1210]]
        %v1212 = vstv %s1211
        %v1213 = vmul.f32 %v1045, %v1212
        %v1214 = vmul.f32 %v1046, %v1212
        %1217 = vrot.lane.b32.xlu0 %v1213, 125
        %v1218 = vpop.permute.xlu0 %1217
        %1219 = vrot.lane.b32.xlu0 %v1214, 125
        %v1220 = vpop.permute.xlu0 %1219
        %v1223 = vadd.f32 %v1163, %v1218
        %v1224 = vadd.f32 %v1164, %v1220
        %s1225 = sadd.s32 %s246, 18
        %s1226 = sld [smem:[#allocation2 + %s1225]]
        %v1227 = vstv %s1226
        %v1228 = vmul.f32 %v1045, %v1227
        %v1229 = vmul.f32 %v1046, %v1227
        %1232 = vrot.lane.b32.xlu0 %v1228, 125
        %v1233 = vpop.permute.xlu0 %1232
        %1234 = vrot.lane.b32.xlu0 %v1229, 125
        %v1235 = vpop.permute.xlu0 %1234
        %v1238 = vadd.f32 %v1178, %v1233
        %v1239 = vadd.f32 %v1179, %v1235
        %s1240 = sadd.s32 %s256, 18
        %s1241 = sld [smem:[#allocation2 + %s1240]]
        %v1242 = vstv %s1241
        %v1243 = vmul.f32 %v1045, %v1242
        %v1244 = vmul.f32 %v1046, %v1242
        %1247 = vrot.lane.b32.xlu0 %v1243, 125
        %v1248 = vpop.permute.xlu0 %1247
        %1249 = vrot.lane.b32.xlu0 %v1244, 125
        %v1250 = vpop.permute.xlu0 %1249
        %v1253 = vadd.f32 %v1193, %v1248
        %v1254 = vadd.f32 %v1194, %v1250
        %s1255 = sadd.s32 %s226, 19
        %s1256 = sld [smem:[#allocation2 + %s1255]]
        %v1257 = vstv %s1256
        %v1258 = vmul.f32 %v1045, %v1257
        %v1259 = vmul.f32 %v1046, %v1257
        %1262 = vrot.lane.b32.xlu0 %v1258, 124
        %v1263 = vpop.permute.xlu0 %1262
        %1264 = vrot.lane.b32.xlu0 %v1259, 124
        %v1265 = vpop.permute.xlu0 %1264
        %v1268 = vadd.f32 %v1208, %v1263
        %v1269 = vadd.f32 %v1209, %v1265
        %s1270 = sadd.s32 %s236, 19
        %s1271 = sld [smem:[#allocation2 + %s1270]]
        %v1272 = vstv %s1271
        %v1273 = vmul.f32 %v1045, %v1272
        %v1274 = vmul.f32 %v1046, %v1272
        %1277 = vrot.lane.b32.xlu0 %v1273, 124
        %v1278 = vpop.permute.xlu0 %1277
        %1279 = vrot.lane.b32.xlu0 %v1274, 124
        %v1280 = vpop.permute.xlu0 %1279
        %v1283 = vadd.f32 %v1223, %v1278
        %v1284 = vadd.f32 %v1224, %v1280
        %s1285 = sadd.s32 %s246, 19
        %s1286 = sld [smem:[#allocation2 + %s1285]]
        %v1287 = vstv %s1286
        %v1288 = vmul.f32 %v1045, %v1287
        %v1289 = vmul.f32 %v1046, %v1287
        %1292 = vrot.lane.b32.xlu0 %v1288, 124
        %v1293 = vpop.permute.xlu0 %1292
        %1294 = vrot.lane.b32.xlu0 %v1289, 124
        %v1295 = vpop.permute.xlu0 %1294
        %v1298 = vadd.f32 %v1238, %v1293
        %v1299 = vadd.f32 %v1239, %v1295
        %s1300 = sadd.s32 %s256, 19
        %s1301 = sld [smem:[#allocation2 + %s1300]]
        %v1302 = vstv %s1301
        %v1303 = vmul.f32 %v1045, %v1302
        %v1304 = vmul.f32 %v1046, %v1302
        %1307 = vrot.lane.b32.xlu0 %v1303, 124
        %v1308 = vpop.permute.xlu0 %1307
        %1309 = vrot.lane.b32.xlu0 %v1304, 124
        %v1310 = vpop.permute.xlu0 %1309
        %v1313 = vadd.f32 %v1253, %v1308
        %v1314 = vadd.f32 %v1254, %v1310
        %v1315 = vld [vmem:[%s211 + $0x4] sm:$0xff]
        %v1316 = vld [vmem:[%s211 + $0xc] sm:$0xf]
        %s1317 = sadd.s32 %s226, 20
        %s1318 = sld [smem:[#allocation2 + %s1317]]
        %v1319 = vstv %s1318
        %v1320 = vmul.f32 %v1315, %v1319
        %v1321 = vmul.f32 %v1316, %v1319
        %v1322 = vadd.f32 %v1268, %v1320
        %v1323 = vadd.f32 %v1269, %v1321
        %s1324 = sadd.s32 %s236, 20
        %s1325 = sld [smem:[#allocation2 + %s1324]]
        %v1326 = vstv %s1325
        %v1327 = vmul.f32 %v1315, %v1326
        %v1328 = vmul.f32 %v1316, %v1326
        %v1329 = vadd.f32 %v1283, %v1327
        %v1330 = vadd.f32 %v1284, %v1328
        %s1331 = sadd.s32 %s246, 20
        %s1332 = sld [smem:[#allocation2 + %s1331]]
        %v1333 = vstv %s1332
        %v1334 = vmul.f32 %v1315, %v1333
        %v1335 = vmul.f32 %v1316, %v1333
        %v1336 = vadd.f32 %v1298, %v1334
        %v1337 = vadd.f32 %v1299, %v1335
        %s1338 = sadd.s32 %s256, 20
        %s1339 = sld [smem:[#allocation2 + %s1338]]
        %v1340 = vstv %s1339
        %v1341 = vmul.f32 %v1315, %v1340
        %v1342 = vmul.f32 %v1316, %v1340
        %v1343 = vadd.f32 %v1313, %v1341
        %v1344 = vadd.f32 %v1314, %v1342
        %s1345 = sadd.s32 %s226, 21
        %s1346 = sld [smem:[#allocation2 + %s1345]]
        %v1347 = vstv %s1346
        %v1348 = vmul.f32 %v1315, %v1347
        %v1349 = vmul.f32 %v1316, %v1347
        %1352 = vrot.lane.b32.xlu0 %v1348, 127
        %v1353 = vpop.permute.xlu0 %1352
        %1354 = vrot.lane.b32.xlu0 %v1349, 127
        %v1355 = vpop.permute.xlu0 %1354
        %v1358 = vadd.f32 %v1322, %v1353
        %v1359 = vadd.f32 %v1323, %v1355
        %s1360 = sadd.s32 %s236, 21
        %s1361 = sld [smem:[#allocation2 + %s1360]]
        %v1362 = vstv %s1361
        %v1363 = vmul.f32 %v1315, %v1362
        %v1364 = vmul.f32 %v1316, %v1362
        %1367 = vrot.lane.b32.xlu0 %v1363, 127
        %v1368 = vpop.permute.xlu0 %1367
        %1369 = vrot.lane.b32.xlu0 %v1364, 127
        %v1370 = vpop.permute.xlu0 %1369
        %v1373 = vadd.f32 %v1329, %v1368
        %v1374 = vadd.f32 %v1330, %v1370
        %s1375 = sadd.s32 %s246, 21
        %s1376 = sld [smem:[#allocation2 + %s1375]]
        %v1377 = vstv %s1376
        %v1378 = vmul.f32 %v1315, %v1377
        %v1379 = vmul.f32 %v1316, %v1377
        %1382 = vrot.lane.b32.xlu0 %v1378, 127
        %v1383 = vpop.permute.xlu0 %1382
        %1384 = vrot.lane.b32.xlu0 %v1379, 127
        %v1385 = vpop.permute.xlu0 %1384
        %v1388 = vadd.f32 %v1336, %v1383
        %v1389 = vadd.f32 %v1337, %v1385
        %s1390 = sadd.s32 %s256, 21
        %s1391 = sld [smem:[#allocation2 + %s1390]]
        %v1392 = vstv %s1391
        %v1393 = vmul.f32 %v1315, %v1392
        %v1394 = vmul.f32 %v1316, %v1392
        %1397 = vrot.lane.b32.xlu0 %v1393, 127
        %v1398 = vpop.permute.xlu0 %1397
        %1399 = vrot.lane.b32.xlu0 %v1394, 127
        %v1400 = vpop.permute.xlu0 %1399
        %v1403 = vadd.f32 %v1343, %v1398
        %v1404 = vadd.f32 %v1344, %v1400
        %s1405 = sadd.s32 %s226, 22
        %s1406 = sld [smem:[#allocation2 + %s1405]]
        %v1407 = vstv %s1406
        %v1408 = vmul.f32 %v1315, %v1407
        %v1409 = vmul.f32 %v1316, %v1407
        %1412 = vrot.lane.b32.xlu0 %v1408, 126
        %v1413 = vpop.permute.xlu0 %1412
        %1414 = vrot.lane.b32.xlu0 %v1409, 126
        %v1415 = vpop.permute.xlu0 %1414
        %v1418 = vadd.f32 %v1358, %v1413
        %v1419 = vadd.f32 %v1359, %v1415
        %s1420 = sadd.s32 %s236, 22
        %s1421 = sld [smem:[#allocation2 + %s1420]]
        %v1422 = vstv %s1421
        %v1423 = vmul.f32 %v1315, %v1422
        %v1424 = vmul.f32 %v1316, %v1422
        %1427 = vrot.lane.b32.xlu0 %v1423, 126
        %v1428 = vpop.permute.xlu0 %1427
        %1429 = vrot.lane.b32.xlu0 %v1424, 126
        %v1430 = vpop.permute.xlu0 %1429
        %v1433 = vadd.f32 %v1373, %v1428
        %v1434 = vadd.f32 %v1374, %v1430
        %s1435 = sadd.s32 %s246, 22
        %s1436 = sld [smem:[#allocation2 + %s1435]]
        %v1437 = vstv %s1436
        %v1438 = vmul.f32 %v1315, %v1437
        %v1439 = vmul.f32 %v1316, %v1437
        %1442 = vrot.lane.b32.xlu0 %v1438, 126
        %v1443 = vpop.permute.xlu0 %1442
        %1444 = vrot.lane.b32.xlu0 %v1439, 126
        %v1445 = vpop.permute.xlu0 %1444
        %v1448 = vadd.f32 %v1388, %v1443
        %v1449 = vadd.f32 %v1389, %v1445
        %s1450 = sadd.s32 %s256, 22
        %s1451 = sld [smem:[#allocation2 + %s1450]]
        %v1452 = vstv %s1451
        %v1453 = vmul.f32 %v1315, %v1452
        %v1454 = vmul.f32 %v1316, %v1452
        %1457 = vrot.lane.b32.xlu0 %v1453, 126
        %v1458 = vpop.permute.xlu0 %1457
        %1459 = vrot.lane.b32.xlu0 %v1454, 126
        %v1460 = vpop.permute.xlu0 %1459
        %v1463 = vadd.f32 %v1403, %v1458
        %v1464 = vadd.f32 %v1404, %v1460
        %s1465 = sadd.s32 %s226, 23
        %s1466 = sld [smem:[#allocation2 + %s1465]]
        %v1467 = vstv %s1466
        %v1468 = vmul.f32 %v1315, %v1467
        %v1469 = vmul.f32 %v1316, %v1467
        %1472 = vrot.lane.b32.xlu0 %v1468, 125
        %v1473 = vpop.permute.xlu0 %1472
        %1474 = vrot.lane.b32.xlu0 %v1469, 125
        %v1475 = vpop.permute.xlu0 %1474
        %v1478 = vadd.f32 %v1418, %v1473
        %v1479 = vadd.f32 %v1419, %v1475
        %s1480 = sadd.s32 %s236, 23
        %s1481 = sld [smem:[#allocation2 + %s1480]]
        %v1482 = vstv %s1481
        %v1483 = vmul.f32 %v1315, %v1482
        %v1484 = vmul.f32 %v1316, %v1482
        %1487 = vrot.lane.b32.xlu0 %v1483, 125
        %v1488 = vpop.permute.xlu0 %1487
        %1489 = vrot.lane.b32.xlu0 %v1484, 125
        %v1490 = vpop.permute.xlu0 %1489
        %v1493 = vadd.f32 %v1433, %v1488
        %v1494 = vadd.f32 %v1434, %v1490
        %s1495 = sadd.s32 %s246, 23
        %s1496 = sld [smem:[#allocation2 + %s1495]]
        %v1497 = vstv %s1496
        %v1498 = vmul.f32 %v1315, %v1497
        %v1499 = vmul.f32 %v1316, %v1497
        %1502 = vrot.lane.b32.xlu0 %v1498, 125
        %v1503 = vpop.permute.xlu0 %1502
        %1504 = vrot.lane.b32.xlu0 %v1499, 125
        %v1505 = vpop.permute.xlu0 %1504
        %v1508 = vadd.f32 %v1448, %v1503
        %v1509 = vadd.f32 %v1449, %v1505
        %s1510 = sadd.s32 %s256, 23
        %s1511 = sld [smem:[#allocation2 + %s1510]]
        %v1512 = vstv %s1511
        %v1513 = vmul.f32 %v1315, %v1512
        %v1514 = vmul.f32 %v1316, %v1512
        %1517 = vrot.lane.b32.xlu0 %v1513, 125
        %v1518 = vpop.permute.xlu0 %1517
        %1519 = vrot.lane.b32.xlu0 %v1514, 125
        %v1520 = vpop.permute.xlu0 %1519
        %v1523 = vadd.f32 %v1463, %v1518
        %v1524 = vadd.f32 %v1464, %v1520
        %s1525 = sadd.s32 %s226, 24
        %s1526 = sld [smem:[#allocation2 + %s1525]]
        %v1527 = vstv %s1526
        %v1528 = vmul.f32 %v1315, %v1527
        %v1529 = vmul.f32 %v1316, %v1527
        %1532 = vrot.lane.b32.xlu0 %v1528, 124
        %v1533 = vpop.permute.xlu0 %1532
        %1534 = vrot.lane.b32.xlu0 %v1529, 124
        %v1535 = vpop.permute.xlu0 %1534
        %v1538 = vadd.f32 %v1478, %v1533
        %v1539 = vadd.f32 %v1479, %v1535
        %s1540 = sadd.s32 %s236, 24
        %s1541 = sld [smem:[#allocation2 + %s1540]]
        %v1542 = vstv %s1541
        %v1543 = vmul.f32 %v1315, %v1542
        %v1544 = vmul.f32 %v1316, %v1542
        %1547 = vrot.lane.b32.xlu0 %v1543, 124
        %v1548 = vpop.permute.xlu0 %1547
        %1549 = vrot.lane.b32.xlu0 %v1544, 124
        %v1550 = vpop.permute.xlu0 %1549
        %v1553 = vadd.f32 %v1493, %v1548
        %v1554 = vadd.f32 %v1494, %v1550
        %s1555 = sadd.s32 %s246, 24
        %s1556 = sld [smem:[#allocation2 + %s1555]]
        %v1557 = vstv %s1556
        %v1558 = vmul.f32 %v1315, %v1557
        %v1559 = vmul.f32 %v1316, %v1557
        %1562 = vrot.lane.b32.xlu0 %v1558, 124
        %v1563 = vpop.permute.xlu0 %1562
        %1564 = vrot.lane.b32.xlu0 %v1559, 124
        %v1565 = vpop.permute.xlu0 %1564
        %v1568 = vadd.f32 %v1508, %v1563
        %v1569 = vadd.f32 %v1509, %v1565
        %s1570 = sadd.s32 %s256, 24
        %s1571 = sld [smem:[#allocation2 + %s1570]]
        %v1572 = vstv %s1571
        %v1573 = vmul.f32 %v1315, %v1572
        %v1574 = vmul.f32 %v1316, %v1572
        %1577 = vrot.lane.b32.xlu0 %v1573, 124
        %v1578 = vpop.permute.xlu0 %1577
        %1579 = vrot.lane.b32.xlu0 %v1574, 124
        %v1580 = vpop.permute.xlu0 %1579
        %v1583 = vadd.f32 %v1523, %v1578
        %v1584 = vadd.f32 %v1524, %v1580
        %v1585 = vmax.f32 %v1538, 0.0
        %v1586 = vmax.f32 %v1539, 0.0
        %vm1587 = vcmask 97280
        %1588 = vst.msk [vmem:[%s221] sm:$0xff] %vm1587, %v1585
        %vm1589 = vcmask 93184
        %1590 = vst.msk [vmem:[%s221 + $0x8] sm:$0xf] %vm1589, %v1586
        %v1591 = vmax.f32 %v1553, 0.0
        %v1592 = vmax.f32 %v1554, 0.0
        %s1593 = scalar_lea.vmem %s221, 16
        %1594 = vst.msk [vmem:[%s1593] sm:$0xff] %vm1587, %v1591
        %1595 = vst.msk [vmem:[%s1593 + $0x8] sm:$0xf] %vm1589, %v1592
        %v1596 = vmax.f32 %v1568, 0.0
        %v1597 = vmax.f32 %v1569, 0.0
        %s1598 = scalar_lea.vmem %s221, 32
        %1599 = vst.msk [vmem:[%s1598] sm:$0xff] %vm1587, %v1596
        %1600 = vst.msk [vmem:[%s1598 + $0x8] sm:$0xf] %vm1589, %v1597
        %v1601 = vmax.f32 %v1583, 0.0
        %v1602 = vmax.f32 %v1584, 0.0
        %s1603 = scalar_lea.vmem %s221, 48
        %1604 = vst.msk [vmem:[%s1603] sm:$0xff] %vm1587, %v1601
        %1605 = vst.msk [vmem:[%s1603 + $0x8] sm:$0xf] %vm1589, %v1602
        %s1606 = smul.u32 4, %s21
        %p1607 = scmp.lt.s32.totalorder %s20, 1
        %s1608 = scalar_select %p1607, %s20, 1
        %p1609 = scmp.lt.s32.totalorder %s1606, 3
        %s1610 = scalar_select %p1609, %s1606, 3
        %s1611 = smul.addr %s1610, 2
        %s1612 = smul.addr %s1608, 8
        %s1613 = sadd.s32 %s1611, %s1612
        %s1614 = smul.addr %s1613, 8
        %s1615 = scalar_lea.vmem %s3, %s1614
        // Predicated region
        $region41: #{gabor_layer_forward.1} parent=31 // pred_check
          %p1616 = pneg %p116
        $region42: #{gabor_layer_forward.1} parent=31 // pred_check_branch
          %1618 = sbr.rel (%p1616) target = $region44
        $region43: #{gabor_layer_forward.1} parent=31 // pred_region
          %s1619 = smul.u32 4, %s21
        $region44: #{gabor_layer_forward.1} parent=31 // pred_fallthru
          _
      $region32: #{gabor_layer_forward.1} parent=5 // pred_fallthru
        _
      %p1620 = scmp.le.s32.totalorder 2, %s11
      // Predicated region
      $region45: #{gabor_layer_forward.1} parent=5 // pred_check
        %p1621 = pneg %p1620
      $region46: #{gabor_layer_forward.1} parent=5 // pred_check_branch
        %1623 = sbr.rel (%p1621) target = $region48
      $region47: #{gabor_layer_forward.1} parent=5 // pred_region
        %s1624 = ssub.s32 %s11, 2
        // Predicated region
        $region49: #{gabor_layer_forward.1} parent=47 // pred_check
          %p1625 = pneg %p122
        $region50: #{gabor_layer_forward.1} parent=47 // pred_check_branch
          %1627 = sbr.rel (%p1625) target = $region52
        $region51: #{gabor_layer_forward.1} parent=47 // pred_region
          %s1628 = smul.u32 4, %s23
          %p1629 = scmp.lt.s32.totalorder %s22, 1
          %s1630 = scalar_select %p1629, %s22, 1
          %p1631 = scmp.lt.s32.totalorder %s1628, 3
          %s1632 = scalar_select %p1631, %s1628, 3
          %s1633 = smul.addr %s1632, 2
          %s1634 = smul.addr %s1630, 8
          %s1635 = sadd.s32 %s1633, %s1634
          %s1636 = smul.addr %s1635, 8
          %s1637 = scalar_lea.vmem %s3, %s1636
        $region52: #{gabor_layer_forward.1} parent=47 // pred_fallthru
          _
      $region48: #{gabor_layer_forward.1} parent=5 // pred_fallthru
        _
    $region6: #{gabor_layer_forward.1} parent=1 // loop_footer
      %s15 = sadd.s32 1, %s11
    $region7: #{gabor_layer_forward.1} parent=1 // loop_footer_branch
      %10 = sbr.rel target = $region3
    $region8: #{gabor_layer_forward.1} parent=1 // loop_exit
      _
    %1638 = vsyncpa [#allocation3], 1
    %s1639 = scalar_lea.sflag [#allocation3], 1
    %1640 = vsyncpa %s1639, 1
    %1641 = vsyncpa [#allocation5], 1

</llo_original>
